<compile_context>
chip_gen: v7x
topology: tpu7x:2x2x1
jax: 0.10.0
libtpu: 0.0.40
codegen_flags: <defaults>
</compile_context>

<pallas_src>
import jax
import jax.numpy as jnp
from jax import lax
from jax.experimental import pallas as pl
from jax.experimental.pallas import tpu as pltpu

# CRF label vocabulary (fixed by the reference module: {'0','1','<pad>','<start>','<end>'}).
LABEL_SIZE = 5
START_IDX = 3
END_IDX = 4
PAD_IDX = 2


# --------------------------------------------------------------------------------------
# Pallas kernel: one batch tile per grid step, batch on lanes.
#   emis_ref : (S, L, TB) f32   emissions, emis[s, j, b] = lstm_scores[b, s, j]
#   trans_ref: (L, L)     f32   transition[i, j]
#   tags_ref : (S, TB)    i32   gold tags (transposed)
#   mask_ref : (S, TB)    i32   validity mask (transposed)
#   lens_ref : (1, TB)    i32   sequence lengths (0 marks batch-padding lanes)
#   out_ref  : (1, 8,128) f32   [0,0,0] = partial unlabeled sum, [0,0,1] = partial labeled sum
# --------------------------------------------------------------------------------------
def _crf_kernel(emis_ref, trans_ref, tags_ref, mask_ref, lens_ref, out_ref):
    S, L, TB = emis_ref.shape

    emis = emis_ref[...]                       # (S, L, TB)
    trans = trans_ref[...]                     # (L, L)
    tags = tags_ref[...]                       # (S, TB)
    mask = mask_ref[...]                       # (S, TB)
    lens = lens_ref[...]                       # (1, TB)

    valid = lens >= 1                          # (1, TB); padded lanes carry lens == 0

    t_start = trans[START_IDX, :]              # (L,)  transition[<start>, :]
    t_end = trans[:, END_IDX]                  # (L,)  transition[:, <end>]
    trans_ijb = trans[:, :, None]              # (L_i, L_j, 1), hoisted out of the time loop

    # ---------------- forward algorithm (log-partition), batch on lanes ----------------
    # NOTE: like the PyTorch reference, every *real* row is assumed to have word_seq_lens >= 1.
    alpha = emis[0] + t_start[:, None]                               # (L, TB)
    last_alpha = jnp.where(lens == 1, alpha, 0.0)                    # (L, TB)

    def step(t, alpha, last_alpha, e_t):
        # before[i, j, b] = alpha[i, b] + transition[i, j] + emis[t, j, b]
        before = alpha[:, None, :] + trans_ijb + e_t[None, :, :]     # (L_i, L_j, TB)
        m = jnp.max(before, axis=0)                                  # (L_j, TB)
        alpha_new = m + jnp.log(jnp.sum(jnp.exp(before - m[None, :, :]), axis=0))
        last_alpha_new = jnp.where(lens == t + 1, alpha_new, last_alpha)
        return alpha_new, last_alpha_new

    if S <= 32:
        # Small static S: full unroll (LLO sees everything).
        for t in range(1, S):
            alpha, last_alpha = step(t, alpha, last_alpha, emis[t])
    else:
        # Large S: bounded live ranges via fori_loop, emission row read per step from the ref.
        def body(t, carry):
            a, la = carry
            return step(t, a, la, emis_ref[t])
        alpha, last_alpha = lax.fori_loop(1, S, body, (alpha, last_alpha), unroll=4)

    la = last_alpha + t_end[:, None]                                 # (L, TB)
    m2 = jnp.max(la, axis=0, keepdims=True)                          # (1, TB)
    logz = m2 + jnp.log(jnp.sum(jnp.exp(la - m2), axis=0, keepdims=True))
    unlabeled = jnp.sum(jnp.where(valid, logz, 0.0))

    # ---------------- gold (labeled) score — fully vectorized gathers ----------------
    # Emission part: gold_e[s, b] = emis[s, tags[s, b], b] via lane-iota compare/select.
    lane_l = lax.broadcasted_iota(jnp.int32, (S, L, TB), 1)
    gold_e = jnp.sum(jnp.where(lane_l == tags[:, None, :], emis, 0.0), axis=1)     # (S, TB)
    row_s = lax.broadcasted_iota(jnp.int32, (S, TB), 0)
    keep_e = jnp.logical_and(jnp.logical_or(row_s == 0, mask > 0), valid)
    lab_emis = jnp.sum(jnp.where(keep_e, gold_e, 0.0))

    # Begin transition: transition[<start>, tags[0, b]].
    iota_lb = lax.broadcasted_iota(jnp.int32, (L, TB), 0)
    begin = jnp.sum(jnp.where(iota_lb == tags[0:1, :], t_start[:, None], 0.0),
                    axis=0, keepdims=True)                                          # (1, TB)

    # End transition: transition[tags[lens-1, b], <end>].
    tag_last = jnp.sum(jnp.where(row_s == (lens - 1), tags, 0), axis=0, keepdims=True)  # (1, TB)
    end = jnp.sum(jnp.where(iota_lb == tag_last, t_end[:, None], 0.0),
                  axis=0, keepdims=True)                                            # (1, TB)

    # Middle transitions: sum_{s>=1} mask[s,b] * transition[tags[s-1,b], tags[s,b]].
    if S > 1:
        prev = tags[:-1, :]                                                         # (S-1, TB)
        cur = tags[1:, :]                                                           # (S-1, TB)
        row_g = jnp.zeros((S - 1, L, TB), jnp.float32)
        for i in range(L):                                                          # L = 5, static
            row_g = row_g + jnp.where(prev[:, None, :] == i,
                                      trans[i, :][None, :, None], 0.0)
        lane_lm = lax.broadcasted_iota(jnp.int32, (S - 1, L, TB), 1)
        mid = jnp.sum(jnp.where(lane_lm == cur[:, None, :], row_g, 0.0), axis=1)    # (S-1, TB)
        lab_mid = jnp.sum(jnp.where(mask[1:, :] > 0, mid, 0.0))
    else:
        lab_mid = jnp.float32(0.0)

    labeled = jnp.sum(jnp.where(valid, begin + end, 0.0)) + lab_mid + lab_emis

    # ---------------- lane-dense packed output: one full (8,128) vreg store ----------------
    r = lax.broadcasted_iota(jnp.int32, out_ref.shape, 1)
    c = lax.broadcasted_iota(jnp.int32, out_ref.shape, 2)
    slab = jnp.where(jnp.logical_and(r == 0, c == 0), unlabeled, 0.0)
    slab = jnp.where(jnp.logical_and(r == 0, c == 1), labeled, slab)
    out_ref[...] = slab


# --------------------------------------------------------------------------------------
# Wrapper: LinearCRF.forward(lstm_scores, word_seq_lens, tags, mask) -> (unlabeled, labeled)
# --------------------------------------------------------------------------------------
def linear_crf_scores(transition, lstm_scores, word_seq_lens, tags, mask):
    """transition: (L,L); lstm_scores: (B,S,L); word_seq_lens: (B,); tags: (B,S); mask: (B,S).

    NOTE: like the PyTorch reference, word_seq_lens must be >= 1 for every real batch row.
    """
    B, S, L = lstm_scores.shape
    assert L == LABEL_SIZE

    # Batch tile = lane width (128) when the batch is large; one tile otherwise.
    TB = 128 if B > 128 else B
    num_tiles = pl.cdiv(B, TB)
    Bp = num_tiles * TB

    # Layout plumbing only: put batch on the lane (last) axis.
    emis_slb = jnp.transpose(lstm_scores.astype(jnp.float32), (1, 2, 0))   # (S, L, B)
    tags_sb = jnp.transpose(tags.astype(jnp.int32), (1, 0))                # (S, B)
    mask_sb = jnp.transpose(mask.astype(jnp.int32), (1, 0))                # (S, B)
    lens_b = word_seq_lens.astype(jnp.int32).reshape(1, B)                 # (1, B)

    if Bp != B:  # pad batch lanes; padded lanes carry lens == 0 and are masked in-kernel
        pad = Bp - B
        emis_slb = jnp.pad(emis_slb, ((0, 0), (0, 0), (0, pad)))
        tags_sb = jnp.pad(tags_sb, ((0, 0), (0, pad)))
        mask_sb = jnp.pad(mask_sb, ((0, 0), (0, pad)))
        lens_b = jnp.pad(lens_b, ((0, 0), (0, pad)))

    trans = transition.astype(jnp.float32)

    grid_spec = pltpu.PrefetchScalarGridSpec(
        num_scalar_prefetch=0,
        grid=(num_tiles,),                                            # parallel over batch tiles
        in_specs=[
            pl.BlockSpec((S, L, TB), lambda i: (0, 0, i)),            # emissions (S, L, B-tile)
            pl.BlockSpec((L, L), lambda i: (0, 0)),                   # transition table (once)
            pl.BlockSpec((S, TB), lambda i: (0, i)),                  # tags
            pl.BlockSpec((S, TB), lambda i: (0, i)),                  # mask
            pl.BlockSpec((1, TB), lambda i: (0, i)),                  # lengths
        ],
        out_specs=pl.BlockSpec((1, 8, 128), lambda i: (i, 0, 0)),     # per-tile partial sums
    )
    out = pl.pallas_call(
        _crf_kernel,
        grid_spec=grid_spec,
        out_shape=jax.ShapeDtypeStruct((num_tiles, 8, 128), jnp.float32),
        compiler_params=pltpu.CompilerParams(
            dimension_semantics=("parallel",),                        # independent batch tiles
        ),
    )(emis_slb, trans, tags_sb, mask_sb, lens_b)

    unlabeled = jnp.sum(out[:, 0, 0])
    labeled = jnp.sum(out[:, 0, 1])
    return unlabeled, labeled


# --------------------------------------------------------------------------------------
# Pure-JAX reference (direct transcription of the PyTorch module) for a correctness check.
# --------------------------------------------------------------------------------------
def _lse(x, axis):
    m = jnp.max(x, axis=axis, keepdims=True)
    return jnp.squeeze(m, axis=axis) + jnp.log(jnp.sum(jnp.exp(x - m), axis=axis))


def _reference_scores(transition, lstm_scores, word_seq_lens, tags, mask):
    B, S, L = lstm_scores.shape
    trans = transition.astype(jnp.float32)
    emis = lstm_scores.astype(jnp.float32)
    lens = word_seq_lens.astype(jnp.int32)
    tags = tags.astype(jnp.int32)

    alpha = emis[:, 0, :] + trans[START_IDX][None, :]
    last_alpha = jnp.where((lens == 1)[:, None], alpha, jnp.zeros_like(alpha))
    for t in range(1, S):
        before = alpha[:, :, None] + trans[None, :, :] + emis[:, t, None, :]
        alpha = _lse(before, axis=1)
        last_alpha = jnp.where((lens == t + 1)[:, None], alpha, last_alpha)
    la = last_alpha + trans[:, END_IDX][None, :]
    unlab = jnp.sum(_lse(la, axis=1))

    gold_e = jnp.take_along_axis(emis, tags[:, :, None], axis=2)[:, :, 0]        # (B,S)
    begin = trans[START_IDX, tags[:, 0]] + gold_e[:, 0]
    end_tag = tags[jnp.arange(B), lens - 1]
    end = trans[end_tag, END_IDX]
    mid = (trans[tags[:, :-1], tags[:, 1:]] + gold_e[:, 1:]) * mask[:, 1:].astype(jnp.float32)
    lab = jnp.sum(begin) + jnp.sum(end) + jnp.sum(mid)
    return unlab, lab


if __name__ == "__main__":
    key = jax.random.PRNGKey(0)
    k_trans, k_scores, k_tags = jax.random.split(key, 3)

    B, S = 2, 8                                        # batch=2, seq=8, labels=5

    transition = jax.random.normal(k_trans, (LABEL_SIZE, LABEL_SIZE), jnp.float32)
    transition = transition.at[:, START_IDX].set(-10000.0)
    transition = transition.at[END_IDX, :].set(-10000.0)
    transition = transition.at[:, PAD_IDX].set(-10000.0)
    transition = transition.at[PAD_IDX, :].set(-10000.0)

    lstm_scores = jax.random.normal(k_scores, (B, S, LABEL_SIZE), jnp.float32)
    word_seq_lens = jnp.array([8, 5], dtype=jnp.int32)             # >= 1, as the reference assumes
    tags = jax.random.randint(k_tags, (B, S), 0, 2, dtype=jnp.int32)   # real labels in {0, 1}
    mask = (jnp.arange(S)[None, :] < word_seq_lens[:, None]).astype(jnp.int32)

    unlab, lab = linear_crf_scores(transition, lstm_scores, word_seq_lens, tags, mask)
    unlab, lab = jax.block_until_ready((unlab, lab))

    ref_unlab, ref_lab = _reference_scores(transition, lstm_scores, word_seq_lens, tags, mask)
    assert bool(jnp.isfinite(unlab)) and bool(jnp.isfinite(lab)), (unlab, lab)
    assert bool(jnp.allclose(unlab, ref_unlab, rtol=2e-3, atol=1e-2)), (unlab, ref_unlab)
    assert bool(jnp.allclose(lab, ref_lab, rtol=2e-3, atol=1e-2)), (lab, ref_lab)
    print("KERNEL_OK")
</pallas_src>

<mosaic_0001>
module attributes {stable_mosaic.version = 11 : i64} {
  func.func @_crf_kernel(%arg0: i32, %arg1: memref<8x5x2xf32, #tpu.memory_space<vmem>>, %arg2: memref<5x5xf32, #tpu.memory_space<vmem>>, %arg3: memref<8x2xi32, #tpu.memory_space<vmem>>, %arg4: memref<8x2xi32, #tpu.memory_space<vmem>>, %arg5: memref<1x2xi32, #tpu.memory_space<vmem>>, %arg6: memref<1x8x128xf32, #tpu.memory_space<vmem>>) attributes {dimension_semantics = [#tpu.dimension_semantics<parallel>], iteration_bounds = array<i64: 1>, scalar_prefetch = 0 : i64, scratch_operands = 0 : i64, tpu.core_type = #tpu.core_type<tc>, window_params = [{transform_indices = @transform_0, window_bounds = array<i64: 8, 5, 2>}, {pipeline_mode = #tpu.pipeline_mode<synchronous>, transform_indices = @transform_1, window_bounds = array<i64: 5, 5>}, {transform_indices = @transform_2, window_bounds = array<i64: 8, 2>}, {transform_indices = @transform_3, window_bounds = array<i64: 8, 2>}, {transform_indices = @transform_4, window_bounds = array<i64: 1, 2>}, {transform_indices = @transform_5, window_bounds = array<i64: 1, 8, 128>}]} {
    %c0 = arith.constant 0 : index
    %c0_0 = arith.constant 0 : index
    %c0_1 = arith.constant 0 : index
    %0 = vector.load %arg1[%c0, %c0_0, %c0_1] : memref<8x5x2xf32, #tpu.memory_space<vmem>>, vector<8x5x2xf32>
    %c0_2 = arith.constant 0 : index
    %c0_3 = arith.constant 0 : index
    %1 = vector.load %arg2[%c0_2, %c0_3] : memref<5x5xf32, #tpu.memory_space<vmem>>, vector<5x5xf32>
    %c0_4 = arith.constant 0 : index
    %c0_5 = arith.constant 0 : index
    %2 = vector.load %arg3[%c0_4, %c0_5] : memref<8x2xi32, #tpu.memory_space<vmem>>, vector<8x2xi32>
    %c0_6 = arith.constant 0 : index
    %c0_7 = arith.constant 0 : index
    %3 = vector.load %arg4[%c0_6, %c0_7] : memref<8x2xi32, #tpu.memory_space<vmem>>, vector<8x2xi32>
    %c0_8 = arith.constant 0 : index
    %c0_9 = arith.constant 0 : index
    %4 = vector.load %arg5[%c0_8, %c0_9] : memref<1x2xi32, #tpu.memory_space<vmem>>, vector<1x2xi32>
    %c1_i32 = arith.constant 1 : i32
    %5 = vector.broadcast %c1_i32 : i32 to vector<1x2xi32>
    %6 = arith.cmpi sge, %4, %5 : vector<1x2xi32>
    %7 = vector.extract_strided_slice %1 {offsets = [3, 0], sizes = [1, 5], strides = [1, 1]} : vector<5x5xf32> to vector<1x5xf32>
    %8 = vector.shape_cast %7 : vector<1x5xf32> to vector<5xf32>
    %9 = vector.extract_strided_slice %1 {offsets = [0, 4], sizes = [5, 1], strides = [1, 1]} : vector<5x5xf32> to vector<5x1xf32>
    %10 = vector.shape_cast %9 : vector<5x1xf32> to vector<5xf32>
    %11 = vector.shape_cast %1 : vector<5x5xf32> to vector<5x5x1xf32>
    %12 = vector.extract_strided_slice %0 {offsets = [0, 0, 0], sizes = [1, 5, 2], strides = [1, 1, 1]} : vector<8x5x2xf32> to vector<1x5x2xf32>
    %13 = vector.shape_cast %12 : vector<1x5x2xf32> to vector<5x2xf32>
    %14 = vector.shape_cast %8 : vector<5xf32> to vector<5x1xf32>
    %15 = vector.broadcast %14 : vector<5x1xf32> to vector<5x2xf32>
    %16 = arith.addf %13, %15 : vector<5x2xf32>
    %c1_i32_10 = arith.constant 1 : i32
    %17 = vector.broadcast %c1_i32_10 : i32 to vector<1x2xi32>
    %18 = arith.cmpi eq, %4, %17 : vector<1x2xi32>
    %cst = arith.constant 0.000000e+00 : f32
    %19 = vector.shape_cast %18 : vector<1x2xi1> to vector<1x2xi1>
    %20 = vector.broadcast %19 : vector<1x2xi1> to vector<5x2xi1>
    %21 = vector.broadcast %cst : f32 to vector<5x2xf32>
    %22 = arith.select %20, %16, %21 : vector<5x2xi1>, vector<5x2xf32>
    %23 = vector.extract_strided_slice %0 {offsets = [1, 0, 0], sizes = [1, 5, 2], strides = [1, 1, 1]} : vector<8x5x2xf32> to vector<1x5x2xf32>
    %24 = vector.shape_cast %23 : vector<1x5x2xf32> to vector<5x2xf32>
    %25 = vector.shape_cast %16 : vector<5x2xf32> to vector<5x1x2xf32>
    %26 = vector.broadcast %25 : vector<5x1x2xf32> to vector<5x5x2xf32>
    %27 = vector.broadcast %11 : vector<5x5x1xf32> to vector<5x5x2xf32>
    %28 = arith.addf %26, %27 : vector<5x5x2xf32>
    %29 = vector.shape_cast %24 : vector<5x2xf32> to vector<1x5x2xf32>
    %30 = vector.broadcast %29 : vector<1x5x2xf32> to vector<5x5x2xf32>
    %31 = arith.addf %28, %30 : vector<5x5x2xf32>
    %cst_11 = arith.constant dense<0xFF800000> : vector<5x2xf32>
    %32 = vector.multi_reduction <maximumf>, %31, %cst_11 [0] : vector<5x5x2xf32> to vector<5x2xf32>
    %33 = vector.shape_cast %32 : vector<5x2xf32> to vector<1x5x2xf32>
    %34 = vector.broadcast %33 : vector<1x5x2xf32> to vector<5x5x2xf32>
    %35 = arith.subf %31, %34 : vector<5x5x2xf32>
    %36 = math.exp %35 : vector<5x5x2xf32>
    %cst_12 = arith.constant dense<0.000000e+00> : vector<5x2xf32>
    %37 = vector.multi_reduction <add>, %36, %cst_12 [0] : vector<5x5x2xf32> to vector<5x2xf32>
    %38 = math.log %37 : vector<5x2xf32>
    %39 = arith.addf %32, %38 : vector<5x2xf32>
    %c2_i32 = arith.constant 2 : i32
    %40 = vector.broadcast %c2_i32 : i32 to vector<1x2xi32>
    %41 = arith.cmpi eq, %4, %40 : vector<1x2xi32>
    %42 = vector.shape_cast %41 : vector<1x2xi1> to vector<1x2xi1>
    %43 = vector.broadcast %42 : vector<1x2xi1> to vector<5x2xi1>
    %44 = arith.select %43, %39, %22 : vector<5x2xi1>, vector<5x2xf32>
    %45 = vector.extract_strided_slice %0 {offsets = [2, 0, 0], sizes = [1, 5, 2], strides = [1, 1, 1]} : vector<8x5x2xf32> to vector<1x5x2xf32>
    %46 = vector.shape_cast %45 : vector<1x5x2xf32> to vector<5x2xf32>
    %47 = vector.shape_cast %39 : vector<5x2xf32> to vector<5x1x2xf32>
    %48 = vector.broadcast %47 : vector<5x1x2xf32> to vector<5x5x2xf32>
    %49 = vector.broadcast %11 : vector<5x5x1xf32> to vector<5x5x2xf32>
    %50 = arith.addf %48, %49 : vector<5x5x2xf32>
    %51 = vector.shape_cast %46 : vector<5x2xf32> to vector<1x5x2xf32>
    %52 = vector.broadcast %51 : vector<1x5x2xf32> to vector<5x5x2xf32>
    %53 = arith.addf %50, %52 : vector<5x5x2xf32>
    %cst_13 = arith.constant dense<0xFF800000> : vector<5x2xf32>
    %54 = vector.multi_reduction <maximumf>, %53, %cst_13 [0] : vector<5x5x2xf32> to vector<5x2xf32>
    %55 = vector.shape_cast %54 : vector<5x2xf32> to vector<1x5x2xf32>
    %56 = vector.broadcast %55 : vector<1x5x2xf32> to vector<5x5x2xf32>
    %57 = arith.subf %53, %56 : vector<5x5x2xf32>
    %58 = math.exp %57 : vector<5x5x2xf32>
    %cst_14 = arith.constant dense<0.000000e+00> : vector<5x2xf32>
    %59 = vector.multi_reduction <add>, %58, %cst_14 [0] : vector<5x5x2xf32> to vector<5x2xf32>
    %60 = math.log %59 : vector<5x2xf32>
    %61 = arith.addf %54, %60 : vector<5x2xf32>
    %c3_i32 = arith.constant 3 : i32
    %62 = vector.broadcast %c3_i32 : i32 to vector<1x2xi32>
    %63 = arith.cmpi eq, %4, %62 : vector<1x2xi32>
    %64 = vector.shape_cast %63 : vector<1x2xi1> to vector<1x2xi1>
    %65 = vector.broadcast %64 : vector<1x2xi1> to vector<5x2xi1>
    %66 = arith.select %65, %61, %44 : vector<5x2xi1>, vector<5x2xf32>
    %67 = vector.extract_strided_slice %0 {offsets = [3, 0, 0], sizes = [1, 5, 2], strides = [1, 1, 1]} : vector<8x5x2xf32> to vector<1x5x2xf32>
    %68 = vector.shape_cast %67 : vector<1x5x2xf32> to vector<5x2xf32>
    %69 = vector.shape_cast %61 : vector<5x2xf32> to vector<5x1x2xf32>
    %70 = vector.broadcast %69 : vector<5x1x2xf32> to vector<5x5x2xf32>
    %71 = vector.broadcast %11 : vector<5x5x1xf32> to vector<5x5x2xf32>
    %72 = arith.addf %70, %71 : vector<5x5x2xf32>
    %73 = vector.shape_cast %68 : vector<5x2xf32> to vector<1x5x2xf32>
    %74 = vector.broadcast %73 : vector<1x5x2xf32> to vector<5x5x2xf32>
    %75 = arith.addf %72, %74 : vector<5x5x2xf32>
    %cst_15 = arith.constant dense<0xFF800000> : vector<5x2xf32>
    %76 = vector.multi_reduction <maximumf>, %75, %cst_15 [0] : vector<5x5x2xf32> to vector<5x2xf32>
    %77 = vector.shape_cast %76 : vector<5x2xf32> to vector<1x5x2xf32>
    %78 = vector.broadcast %77 : vector<1x5x2xf32> to vector<5x5x2xf32>
    %79 = arith.subf %75, %78 : vector<5x5x2xf32>
    %80 = math.exp %79 : vector<5x5x2xf32>
    %cst_16 = arith.constant dense<0.000000e+00> : vector<5x2xf32>
    %81 = vector.multi_reduction <add>, %80, %cst_16 [0] : vector<5x5x2xf32> to vector<5x2xf32>
    %82 = math.log %81 : vector<5x2xf32>
    %83 = arith.addf %76, %82 : vector<5x2xf32>
    %c4_i32 = arith.constant 4 : i32
    %84 = vector.broadcast %c4_i32 : i32 to vector<1x2xi32>
    %85 = arith.cmpi eq, %4, %84 : vector<1x2xi32>
    %86 = vector.shape_cast %85 : vector<1x2xi1> to vector<1x2xi1>
    %87 = vector.broadcast %86 : vector<1x2xi1> to vector<5x2xi1>
    %88 = arith.select %87, %83, %66 : vector<5x2xi1>, vector<5x2xf32>
    %89 = vector.extract_strided_slice %0 {offsets = [4, 0, 0], sizes = [1, 5, 2], strides = [1, 1, 1]} : vector<8x5x2xf32> to vector<1x5x2xf32>
    %90 = vector.shape_cast %89 : vector<1x5x2xf32> to vector<5x2xf32>
    %91 = vector.shape_cast %83 : vector<5x2xf32> to vector<5x1x2xf32>
    %92 = vector.broadcast %91 : vector<5x1x2xf32> to vector<5x5x2xf32>
    %93 = vector.broadcast %11 : vector<5x5x1xf32> to vector<5x5x2xf32>
    %94 = arith.addf %92, %93 : vector<5x5x2xf32>
    %95 = vector.shape_cast %90 : vector<5x2xf32> to vector<1x5x2xf32>
    %96 = vector.broadcast %95 : vector<1x5x2xf32> to vector<5x5x2xf32>
    %97 = arith.addf %94, %96 : vector<5x5x2xf32>
    %cst_17 = arith.constant dense<0xFF800000> : vector<5x2xf32>
    %98 = vector.multi_reduction <maximumf>, %97, %cst_17 [0] : vector<5x5x2xf32> to vector<5x2xf32>
    %99 = vector.shape_cast %98 : vector<5x2xf32> to vector<1x5x2xf32>
    %100 = vector.broadcast %99 : vector<1x5x2xf32> to vector<5x5x2xf32>
    %101 = arith.subf %97, %100 : vector<5x5x2xf32>
    %102 = math.exp %101 : vector<5x5x2xf32>
    %cst_18 = arith.constant dense<0.000000e+00> : vector<5x2xf32>
    %103 = vector.multi_reduction <add>, %102, %cst_18 [0] : vector<5x5x2xf32> to vector<5x2xf32>
    %104 = math.log %103 : vector<5x2xf32>
    %105 = arith.addf %98, %104 : vector<5x2xf32>
    %c5_i32 = arith.constant 5 : i32
    %106 = vector.broadcast %c5_i32 : i32 to vector<1x2xi32>
    %107 = arith.cmpi eq, %4, %106 : vector<1x2xi32>
    %108 = vector.shape_cast %107 : vector<1x2xi1> to vector<1x2xi1>
    %109 = vector.broadcast %108 : vector<1x2xi1> to vector<5x2xi1>
    %110 = arith.select %109, %105, %88 : vector<5x2xi1>, vector<5x2xf32>
    %111 = vector.extract_strided_slice %0 {offsets = [5, 0, 0], sizes = [1, 5, 2], strides = [1, 1, 1]} : vector<8x5x2xf32> to vector<1x5x2xf32>
    %112 = vector.shape_cast %111 : vector<1x5x2xf32> to vector<5x2xf32>
    %113 = vector.shape_cast %105 : vector<5x2xf32> to vector<5x1x2xf32>
    %114 = vector.broadcast %113 : vector<5x1x2xf32> to vector<5x5x2xf32>
    %115 = vector.broadcast %11 : vector<5x5x1xf32> to vector<5x5x2xf32>
    %116 = arith.addf %114, %115 : vector<5x5x2xf32>
    %117 = vector.shape_cast %112 : vector<5x2xf32> to vector<1x5x2xf32>
    %118 = vector.broadcast %117 : vector<1x5x2xf32> to vector<5x5x2xf32>
    %119 = arith.addf %116, %118 : vector<5x5x2xf32>
    %cst_19 = arith.constant dense<0xFF800000> : vector<5x2xf32>
    %120 = vector.multi_reduction <maximumf>, %119, %cst_19 [0] : vector<5x5x2xf32> to vector<5x2xf32>
    %121 = vector.shape_cast %120 : vector<5x2xf32> to vector<1x5x2xf32>
    %122 = vector.broadcast %121 : vector<1x5x2xf32> to vector<5x5x2xf32>
    %123 = arith.subf %119, %122 : vector<5x5x2xf32>
    %124 = math.exp %123 : vector<5x5x2xf32>
    %cst_20 = arith.constant dense<0.000000e+00> : vector<5x2xf32>
    %125 = vector.multi_reduction <add>, %124, %cst_20 [0] : vector<5x5x2xf32> to vector<5x2xf32>
    %126 = math.log %125 : vector<5x2xf32>
    %127 = arith.addf %120, %126 : vector<5x2xf32>
    %c6_i32 = arith.constant 6 : i32
    %128 = vector.broadcast %c6_i32 : i32 to vector<1x2xi32>
    %129 = arith.cmpi eq, %4, %128 : vector<1x2xi32>
    %130 = vector.shape_cast %129 : vector<1x2xi1> to vector<1x2xi1>
    %131 = vector.broadcast %130 : vector<1x2xi1> to vector<5x2xi1>
    %132 = arith.select %131, %127, %110 : vector<5x2xi1>, vector<5x2xf32>
    %133 = vector.extract_strided_slice %0 {offsets = [6, 0, 0], sizes = [1, 5, 2], strides = [1, 1, 1]} : vector<8x5x2xf32> to vector<1x5x2xf32>
    %134 = vector.shape_cast %133 : vector<1x5x2xf32> to vector<5x2xf32>
    %135 = vector.shape_cast %127 : vector<5x2xf32> to vector<5x1x2xf32>
    %136 = vector.broadcast %135 : vector<5x1x2xf32> to vector<5x5x2xf32>
    %137 = vector.broadcast %11 : vector<5x5x1xf32> to vector<5x5x2xf32>
    %138 = arith.addf %136, %137 : vector<5x5x2xf32>
    %139 = vector.shape_cast %134 : vector<5x2xf32> to vector<1x5x2xf32>
    %140 = vector.broadcast %139 : vector<1x5x2xf32> to vector<5x5x2xf32>
    %141 = arith.addf %138, %140 : vector<5x5x2xf32>
    %cst_21 = arith.constant dense<0xFF800000> : vector<5x2xf32>
    %142 = vector.multi_reduction <maximumf>, %141, %cst_21 [0] : vector<5x5x2xf32> to vector<5x2xf32>
    %143 = vector.shape_cast %142 : vector<5x2xf32> to vector<1x5x2xf32>
    %144 = vector.broadcast %143 : vector<1x5x2xf32> to vector<5x5x2xf32>
    %145 = arith.subf %141, %144 : vector<5x5x2xf32>
    %146 = math.exp %145 : vector<5x5x2xf32>
    %cst_22 = arith.constant dense<0.000000e+00> : vector<5x2xf32>
    %147 = vector.multi_reduction <add>, %146, %cst_22 [0] : vector<5x5x2xf32> to vector<5x2xf32>
    %148 = math.log %147 : vector<5x2xf32>
    %149 = arith.addf %142, %148 : vector<5x2xf32>
    %c7_i32 = arith.constant 7 : i32
    %150 = vector.broadcast %c7_i32 : i32 to vector<1x2xi32>
    %151 = arith.cmpi eq, %4, %150 : vector<1x2xi32>
    %152 = vector.shape_cast %151 : vector<1x2xi1> to vector<1x2xi1>
    %153 = vector.broadcast %152 : vector<1x2xi1> to vector<5x2xi1>
    %154 = arith.select %153, %149, %132 : vector<5x2xi1>, vector<5x2xf32>
    %155 = vector.extract_strided_slice %0 {offsets = [7, 0, 0], sizes = [1, 5, 2], strides = [1, 1, 1]} : vector<8x5x2xf32> to vector<1x5x2xf32>
    %156 = vector.shape_cast %155 : vector<1x5x2xf32> to vector<5x2xf32>
    %157 = vector.shape_cast %149 : vector<5x2xf32> to vector<5x1x2xf32>
    %158 = vector.broadcast %157 : vector<5x1x2xf32> to vector<5x5x2xf32>
    %159 = vector.broadcast %11 : vector<5x5x1xf32> to vector<5x5x2xf32>
    %160 = arith.addf %158, %159 : vector<5x5x2xf32>
    %161 = vector.shape_cast %156 : vector<5x2xf32> to vector<1x5x2xf32>
    %162 = vector.broadcast %161 : vector<1x5x2xf32> to vector<5x5x2xf32>
    %163 = arith.addf %160, %162 : vector<5x5x2xf32>
    %cst_23 = arith.constant dense<0xFF800000> : vector<5x2xf32>
    %164 = vector.multi_reduction <maximumf>, %163, %cst_23 [0] : vector<5x5x2xf32> to vector<5x2xf32>
    %165 = vector.shape_cast %164 : vector<5x2xf32> to vector<1x5x2xf32>
    %166 = vector.broadcast %165 : vector<1x5x2xf32> to vector<5x5x2xf32>
    %167 = arith.subf %163, %166 : vector<5x5x2xf32>
    %168 = math.exp %167 : vector<5x5x2xf32>
    %cst_24 = arith.constant dense<0.000000e+00> : vector<5x2xf32>
    %169 = vector.multi_reduction <add>, %168, %cst_24 [0] : vector<5x5x2xf32> to vector<5x2xf32>
    %170 = math.log %169 : vector<5x2xf32>
    %171 = arith.addf %164, %170 : vector<5x2xf32>
    %c8_i32 = arith.constant 8 : i32
    %172 = vector.broadcast %c8_i32 : i32 to vector<1x2xi32>
    %173 = arith.cmpi eq, %4, %172 : vector<1x2xi32>
    %174 = vector.shape_cast %173 : vector<1x2xi1> to vector<1x2xi1>
    %175 = vector.broadcast %174 : vector<1x2xi1> to vector<5x2xi1>
    %176 = arith.select %175, %171, %154 : vector<5x2xi1>, vector<5x2xf32>
    %177 = vector.shape_cast %10 : vector<5xf32> to vector<5x1xf32>
    %178 = vector.broadcast %177 : vector<5x1xf32> to vector<5x2xf32>
    %179 = arith.addf %176, %178 : vector<5x2xf32>
    %cst_25 = arith.constant dense<0xFF800000> : vector<2xf32>
    %180 = vector.multi_reduction <maximumf>, %179, %cst_25 [0] : vector<5x2xf32> to vector<2xf32>
    %181 = vector.shape_cast %180 : vector<2xf32> to vector<1x2xf32>
    %182 = vector.broadcast %181 : vector<1x2xf32> to vector<5x2xf32>
    %183 = arith.subf %179, %182 : vector<5x2xf32>
    %184 = math.exp %183 : vector<5x2xf32>
    %cst_26 = arith.constant dense<0.000000e+00> : vector<2xf32>
    %185 = vector.multi_reduction <add>, %184, %cst_26 [0] : vector<5x2xf32> to vector<2xf32>
    %186 = vector.shape_cast %185 : vector<2xf32> to vector<1x2xf32>
    %187 = math.log %186 : vector<1x2xf32>
    %188 = arith.addf %181, %187 : vector<1x2xf32>
    %cst_27 = arith.constant 0.000000e+00 : f32
    %189 = vector.broadcast %cst_27 : f32 to vector<1x2xf32>
    %190 = arith.select %6, %188, %189 : vector<1x2xi1>, vector<1x2xf32>
    %191 = vector.shape_cast %190 : vector<1x2xf32> to vector<1x1x2xf32>
    %cst_28 = arith.constant dense<0.000000e+00> : vector<1xf32>
    %192 = vector.multi_reduction <add>, %191, %cst_28 [1, 2] : vector<1x1x2xf32> to vector<1xf32>
    %193 = vector.shape_cast %192 : vector<1xf32> to vector<1x1x1xf32>
    %194 = vector.extract %193[0, 0, 0] : f32 from vector<1x1x1xf32>
    %195 = tpu.iota {dimensions = array<i32: 1>} : vector<8x5x2xi32>
    %196 = vector.shape_cast %2 : vector<8x2xi32> to vector<8x1x2xi32>
    %197 = vector.broadcast %196 : vector<8x1x2xi32> to vector<8x5x2xi32>
    %198 = arith.cmpi eq, %195, %197 : vector<8x5x2xi32>
    %cst_29 = arith.constant 0.000000e+00 : f32
    %199 = vector.broadcast %cst_29 : f32 to vector<8x5x2xf32>
    %200 = arith.select %198, %0, %199 : vector<8x5x2xi1>, vector<8x5x2xf32>
    %cst_30 = arith.constant dense<0.000000e+00> : vector<8x2xf32>
    %201 = vector.multi_reduction <add>, %200, %cst_30 [1] : vector<8x5x2xf32> to vector<8x2xf32>
    %202 = tpu.iota {dimensions = array<i32: 0>} : vector<8x2xi32>
    %c0_i32 = arith.constant 0 : i32
    %203 = vector.broadcast %c0_i32 : i32 to vector<8x2xi32>
    %204 = arith.cmpi eq, %202, %203 : vector<8x2xi32>
    %c0_i32_31 = arith.constant 0 : i32
    %205 = vector.broadcast %c0_i32_31 : i32 to vector<8x2xi32>
    %206 = arith.cmpi sgt, %3, %205 : vector<8x2xi32>
    %207 = arith.ori %204, %206 : vector<8x2xi1>
    %208 = vector.broadcast %6 : vector<1x2xi1> to vector<8x2xi1>
    %209 = arith.andi %207, %208 : vector<8x2xi1>
    %cst_32 = arith.constant 0.000000e+00 : f32
    %210 = vector.broadcast %cst_32 : f32 to vector<8x2xf32>
    %211 = arith.select %209, %201, %210 : vector<8x2xi1>, vector<8x2xf32>
    %212 = vector.shape_cast %211 : vector<8x2xf32> to vector<1x8x2xf32>
    %cst_33 = arith.constant dense<0.000000e+00> : vector<1xf32>
    %213 = vector.multi_reduction <add>, %212, %cst_33 [1, 2] : vector<1x8x2xf32> to vector<1xf32>
    %214 = vector.shape_cast %213 : vector<1xf32> to vector<1x1x1xf32>
    %215 = vector.extract %214[0, 0, 0] : f32 from vector<1x1x1xf32>
    %216 = tpu.iota {dimensions = array<i32: 0>} : vector<5x2xi32>
    %217 = vector.extract_strided_slice %2 {offsets = [0, 0], sizes = [1, 2], strides = [1, 1]} : vector<8x2xi32> to vector<1x2xi32>
    %218 = vector.broadcast %217 : vector<1x2xi32> to vector<5x2xi32>
    %219 = arith.cmpi eq, %216, %218 : vector<5x2xi32>
    %220 = vector.shape_cast %8 : vector<5xf32> to vector<5x1xf32>
    %cst_34 = arith.constant 0.000000e+00 : f32
    %221 = vector.shape_cast %220 : vector<5x1xf32> to vector<5x1xf32>
    %222 = vector.broadcast %221 : vector<5x1xf32> to vector<5x2xf32>
    %223 = vector.broadcast %cst_34 : f32 to vector<5x2xf32>
    %224 = arith.select %219, %222, %223 : vector<5x2xi1>, vector<5x2xf32>
    %cst_35 = arith.constant dense<0.000000e+00> : vector<2xf32>
    %225 = vector.multi_reduction <add>, %224, %cst_35 [0] : vector<5x2xf32> to vector<2xf32>
    %226 = vector.shape_cast %225 : vector<2xf32> to vector<1x2xf32>
    %c1_i32_36 = arith.constant 1 : i32
    %227 = vector.broadcast %c1_i32_36 : i32 to vector<1x2xi32>
    %228 = arith.subi %4, %227 : vector<1x2xi32>
    %229 = vector.broadcast %228 : vector<1x2xi32> to vector<8x2xi32>
    %230 = arith.cmpi eq, %202, %229 : vector<8x2xi32>
    %c0_i32_37 = arith.constant 0 : i32
    %231 = vector.broadcast %c0_i32_37 : i32 to vector<8x2xi32>
    %232 = arith.select %230, %2, %231 : vector<8x2xi1>, vector<8x2xi32>
    %cst_38 = arith.constant dense<0> : vector<2xi32>
    %233 = vector.multi_reduction <add>, %232, %cst_38 [0] : vector<8x2xi32> to vector<2xi32>
    %234 = vector.shape_cast %233 : vector<2xi32> to vector<1x2xi32>
    %235 = vector.broadcast %234 : vector<1x2xi32> to vector<5x2xi32>
    %236 = arith.cmpi eq, %216, %235 : vector<5x2xi32>
    %237 = vector.shape_cast %10 : vector<5xf32> to vector<5x1xf32>
    %cst_39 = arith.constant 0.000000e+00 : f32
    %238 = vector.shape_cast %237 : vector<5x1xf32> to vector<5x1xf32>
    %239 = vector.broadcast %238 : vector<5x1xf32> to vector<5x2xf32>
    %240 = vector.broadcast %cst_39 : f32 to vector<5x2xf32>
    %241 = arith.select %236, %239, %240 : vector<5x2xi1>, vector<5x2xf32>
    %cst_40 = arith.constant dense<0.000000e+00> : vector<2xf32>
    %242 = vector.multi_reduction <add>, %241, %cst_40 [0] : vector<5x2xf32> to vector<2xf32>
    %243 = vector.shape_cast %242 : vector<2xf32> to vector<1x2xf32>
    %244 = vector.extract_strided_slice %2 {offsets = [0, 0], sizes = [7, 2], strides = [1, 1]} : vector<8x2xi32> to vector<7x2xi32>
    %245 = vector.extract_strided_slice %2 {offsets = [1, 0], sizes = [7, 2], strides = [1, 1]} : vector<8x2xi32> to vector<7x2xi32>
    %cst_41 = arith.constant 0.000000e+00 : f32
    %246 = vector.broadcast %cst_41 : f32 to vector<7x5x2xf32>
    %247 = vector.shape_cast %244 : vector<7x2xi32> to vector<7x1x2xi32>
    %c0_i32_42 = arith.constant 0 : i32
    %248 = vector.broadcast %c0_i32_42 : i32 to vector<7x1x2xi32>
    %249 = arith.cmpi eq, %247, %248 : vector<7x1x2xi32>
    %250 = vector.extract_strided_slice %1 {offsets = [0, 0], sizes = [1, 5], strides = [1, 1]} : vector<5x5xf32> to vector<1x5xf32>
    %251 = vector.shape_cast %250 : vector<1x5xf32> to vector<5xf32>
    %252 = vector.shape_cast %251 : vector<5xf32> to vector<1x5x1xf32>
    %cst_43 = arith.constant 0.000000e+00 : f32
    %253 = vector.shape_cast %249 : vector<7x1x2xi1> to vector<7x1x2xi1>
    %254 = vector.broadcast %253 : vector<7x1x2xi1> to vector<7x5x2xi1>
    %255 = vector.shape_cast %252 : vector<1x5x1xf32> to vector<1x5x1xf32>
    %256 = vector.broadcast %255 : vector<1x5x1xf32> to vector<7x5x2xf32>
    %257 = vector.broadcast %cst_43 : f32 to vector<7x5x2xf32>
    %258 = arith.select %254, %256, %257 : vector<7x5x2xi1>, vector<7x5x2xf32>
    %259 = arith.addf %246, %258 : vector<7x5x2xf32>
    %260 = vector.shape_cast %244 : vector<7x2xi32> to vector<7x1x2xi32>
    %c1_i32_44 = arith.constant 1 : i32
    %261 = vector.broadcast %c1_i32_44 : i32 to vector<7x1x2xi32>
    %262 = arith.cmpi eq, %260, %261 : vector<7x1x2xi32>
    %263 = vector.extract_strided_slice %1 {offsets = [1, 0], sizes = [1, 5], strides = [1, 1]} : vector<5x5xf32> to vector<1x5xf32>
    %264 = vector.shape_cast %263 : vector<1x5xf32> to vector<5xf32>
    %265 = vector.shape_cast %264 : vector<5xf32> to vector<1x5x1xf32>
    %cst_45 = arith.constant 0.000000e+00 : f32
    %266 = vector.shape_cast %262 : vector<7x1x2xi1> to vector<7x1x2xi1>
    %267 = vector.broadcast %266 : vector<7x1x2xi1> to vector<7x5x2xi1>
    %268 = vector.shape_cast %265 : vector<1x5x1xf32> to vector<1x5x1xf32>
    %269 = vector.broadcast %268 : vector<1x5x1xf32> to vector<7x5x2xf32>
    %270 = vector.broadcast %cst_45 : f32 to vector<7x5x2xf32>
    %271 = arith.select %267, %269, %270 : vector<7x5x2xi1>, vector<7x5x2xf32>
    %272 = arith.addf %259, %271 : vector<7x5x2xf32>
    %273 = vector.shape_cast %244 : vector<7x2xi32> to vector<7x1x2xi32>
    %c2_i32_46 = arith.constant 2 : i32
    %274 = vector.broadcast %c2_i32_46 : i32 to vector<7x1x2xi32>
    %275 = arith.cmpi eq, %273, %274 : vector<7x1x2xi32>
    %276 = vector.extract_strided_slice %1 {offsets = [2, 0], sizes = [1, 5], strides = [1, 1]} : vector<5x5xf32> to vector<1x5xf32>
    %277 = vector.shape_cast %276 : vector<1x5xf32> to vector<5xf32>
    %278 = vector.shape_cast %277 : vector<5xf32> to vector<1x5x1xf32>
    %cst_47 = arith.constant 0.000000e+00 : f32
    %279 = vector.shape_cast %275 : vector<7x1x2xi1> to vector<7x1x2xi1>
    %280 = vector.broadcast %279 : vector<7x1x2xi1> to vector<7x5x2xi1>
    %281 = vector.shape_cast %278 : vector<1x5x1xf32> to vector<1x5x1xf32>
    %282 = vector.broadcast %281 : vector<1x5x1xf32> to vector<7x5x2xf32>
    %283 = vector.broadcast %cst_47 : f32 to vector<7x5x2xf32>
    %284 = arith.select %280, %282, %283 : vector<7x5x2xi1>, vector<7x5x2xf32>
    %285 = arith.addf %272, %284 : vector<7x5x2xf32>
    %286 = vector.shape_cast %244 : vector<7x2xi32> to vector<7x1x2xi32>
    %c3_i32_48 = arith.constant 3 : i32
    %287 = vector.broadcast %c3_i32_48 : i32 to vector<7x1x2xi32>
    %288 = arith.cmpi eq, %286, %287 : vector<7x1x2xi32>
    %289 = vector.extract_strided_slice %1 {offsets = [3, 0], sizes = [1, 5], strides = [1, 1]} : vector<5x5xf32> to vector<1x5xf32>
    %290 = vector.shape_cast %289 : vector<1x5xf32> to vector<5xf32>
    %291 = vector.shape_cast %290 : vector<5xf32> to vector<1x5x1xf32>
    %cst_49 = arith.constant 0.000000e+00 : f32
    %292 = vector.shape_cast %288 : vector<7x1x2xi1> to vector<7x1x2xi1>
    %293 = vector.broadcast %292 : vector<7x1x2xi1> to vector<7x5x2xi1>
    %294 = vector.shape_cast %291 : vector<1x5x1xf32> to vector<1x5x1xf32>
    %295 = vector.broadcast %294 : vector<1x5x1xf32> to vector<7x5x2xf32>
    %296 = vector.broadcast %cst_49 : f32 to vector<7x5x2xf32>
    %297 = arith.select %293, %295, %296 : vector<7x5x2xi1>, vector<7x5x2xf32>
    %298 = arith.addf %285, %297 : vector<7x5x2xf32>
    %299 = vector.shape_cast %244 : vector<7x2xi32> to vector<7x1x2xi32>
    %c4_i32_50 = arith.constant 4 : i32
    %300 = vector.broadcast %c4_i32_50 : i32 to vector<7x1x2xi32>
    %301 = arith.cmpi eq, %299, %300 : vector<7x1x2xi32>
    %302 = vector.extract_strided_slice %1 {offsets = [4, 0], sizes = [1, 5], strides = [1, 1]} : vector<5x5xf32> to vector<1x5xf32>
    %303 = vector.shape_cast %302 : vector<1x5xf32> to vector<5xf32>
    %304 = vector.shape_cast %303 : vector<5xf32> to vector<1x5x1xf32>
    %cst_51 = arith.constant 0.000000e+00 : f32
    %305 = vector.shape_cast %301 : vector<7x1x2xi1> to vector<7x1x2xi1>
    %306 = vector.broadcast %305 : vector<7x1x2xi1> to vector<7x5x2xi1>
    %307 = vector.shape_cast %304 : vector<1x5x1xf32> to vector<1x5x1xf32>
    %308 = vector.broadcast %307 : vector<1x5x1xf32> to vector<7x5x2xf32>
    %309 = vector.broadcast %cst_51 : f32 to vector<7x5x2xf32>
    %310 = arith.select %306, %308, %309 : vector<7x5x2xi1>, vector<7x5x2xf32>
    %311 = arith.addf %298, %310 : vector<7x5x2xf32>
    %312 = tpu.iota {dimensions = array<i32: 1>} : vector<7x5x2xi32>
    %313 = vector.shape_cast %245 : vector<7x2xi32> to vector<7x1x2xi32>
    %314 = vector.broadcast %313 : vector<7x1x2xi32> to vector<7x5x2xi32>
    %315 = arith.cmpi eq, %312, %314 : vector<7x5x2xi32>
    %cst_52 = arith.constant 0.000000e+00 : f32
    %316 = vector.broadcast %cst_52 : f32 to vector<7x5x2xf32>
    %317 = arith.select %315, %311, %316 : vector<7x5x2xi1>, vector<7x5x2xf32>
    %cst_53 = arith.constant dense<0.000000e+00> : vector<7x2xf32>
    %318 = vector.multi_reduction <add>, %317, %cst_53 [1] : vector<7x5x2xf32> to vector<7x2xf32>
    %319 = vector.extract_strided_slice %3 {offsets = [1, 0], sizes = [7, 2], strides = [1, 1]} : vector<8x2xi32> to vector<7x2xi32>
    %c0_i32_54 = arith.constant 0 : i32
    %320 = vector.broadcast %c0_i32_54 : i32 to vector<7x2xi32>
    %321 = arith.cmpi sgt, %319, %320 : vector<7x2xi32>
    %cst_55 = arith.constant 0.000000e+00 : f32
    %322 = vector.broadcast %cst_55 : f32 to vector<7x2xf32>
    %323 = arith.select %321, %318, %322 : vector<7x2xi1>, vector<7x2xf32>
    %324 = vector.shape_cast %323 : vector<7x2xf32> to vector<1x7x2xf32>
    %cst_56 = arith.constant dense<0.000000e+00> : vector<1xf32>
    %325 = vector.multi_reduction <add>, %324, %cst_56 [1, 2] : vector<1x7x2xf32> to vector<1xf32>
    %326 = vector.shape_cast %325 : vector<1xf32> to vector<1x1x1xf32>
    %327 = vector.extract %326[0, 0, 0] : f32 from vector<1x1x1xf32>
    %328 = arith.addf %226, %243 : vector<1x2xf32>
    %cst_57 = arith.constant 0.000000e+00 : f32
    %329 = vector.broadcast %cst_57 : f32 to vector<1x2xf32>
    %330 = arith.select %6, %328, %329 : vector<1x2xi1>, vector<1x2xf32>
    %331 = vector.shape_cast %330 : vector<1x2xf32> to vector<1x1x2xf32>
    %cst_58 = arith.constant dense<0.000000e+00> : vector<1xf32>
    %332 = vector.multi_reduction <add>, %331, %cst_58 [1, 2] : vector<1x1x2xf32> to vector<1xf32>
    %333 = vector.shape_cast %332 : vector<1xf32> to vector<1x1x1xf32>
    %334 = vector.extract %333[0, 0, 0] : f32 from vector<1x1x1xf32>
    %335 = arith.addf %334, %327 : f32
    %336 = arith.addf %335, %215 : f32
    %337 = tpu.iota {dimensions = array<i32: 1>} : vector<1x8x128xi32>
    %338 = tpu.iota {dimensions = array<i32: 2>} : vector<1x8x128xi32>
    %c0_i32_59 = arith.constant 0 : i32
    %339 = vector.broadcast %c0_i32_59 : i32 to vector<1x8x128xi32>
    %340 = arith.cmpi eq, %337, %339 : vector<1x8x128xi32>
    %c0_i32_60 = arith.constant 0 : i32
    %341 = vector.broadcast %c0_i32_60 : i32 to vector<1x8x128xi32>
    %342 = arith.cmpi eq, %338, %341 : vector<1x8x128xi32>
    %343 = arith.andi %340, %342 : vector<1x8x128xi1>
    %cst_61 = arith.constant 0.000000e+00 : f32
    %344 = vector.broadcast %194 : f32 to vector<1x8x128xf32>
    %345 = vector.broadcast %cst_61 : f32 to vector<1x8x128xf32>
    %346 = arith.select %343, %344, %345 : vector<1x8x128xi1>, vector<1x8x128xf32>
    %c0_i32_62 = arith.constant 0 : i32
    %347 = vector.broadcast %c0_i32_62 : i32 to vector<1x8x128xi32>
    %348 = arith.cmpi eq, %337, %347 : vector<1x8x128xi32>
    %c1_i32_63 = arith.constant 1 : i32
    %349 = vector.broadcast %c1_i32_63 : i32 to vector<1x8x128xi32>
    %350 = arith.cmpi eq, %338, %349 : vector<1x8x128xi32>
    %351 = arith.andi %348, %350 : vector<1x8x128xi1>
    %352 = vector.broadcast %336 : f32 to vector<1x8x128xf32>
    %353 = arith.select %351, %352, %346 : vector<1x8x128xi1>, vector<1x8x128xf32>
    %c0_64 = arith.constant 0 : index
    %c0_65 = arith.constant 0 : index
    %c0_66 = arith.constant 0 : index
    %354 = vector.load %arg6[%c0_64, %c0_65, %c0_66] : memref<1x8x128xf32, #tpu.memory_space<vmem>>, vector<1x8x128xf32>
    tpu.vector_store %arg6[%c0_64, %c0_65, %c0_66], %353 {strides = array<i32>} : memref<1x8x128xf32, #tpu.memory_space<vmem>>, vector<1x8x128xf32>,
    return
  }
  func.func @transform_0(%arg0: i32) -> (i32, i32, i32) {
    %c0_i32 = arith.constant 0 : i32
    %c0_i32_0 = arith.constant 0 : i32
    %c0_i32_1 = arith.constant 0 : i32
    return %c0_i32, %c0_i32_0, %arg0 : i32, i32, i32
  }
  func.func @transform_1(%arg0: i32) -> (i32, i32) {
    %c0_i32 = arith.constant 0 : i32
    %c0_i32_0 = arith.constant 0 : i32
    %c0_i32_1 = arith.constant 0 : i32
    return %c0_i32, %c0_i32_0 : i32, i32
  }
  func.func @transform_2(%arg0: i32) -> (i32, i32) {
    %c0_i32 = arith.constant 0 : i32
    %c0_i32_0 = arith.constant 0 : i32
    return %c0_i32, %arg0 : i32, i32
  }
  func.func @transform_3(%arg0: i32) -> (i32, i32) {
    %c0_i32 = arith.constant 0 : i32
    %c0_i32_0 = arith.constant 0 : i32
    return %c0_i32, %arg0 : i32, i32
  }
  func.func @transform_4(%arg0: i32) -> (i32, i32) {
    %c0_i32 = arith.constant 0 : i32
    %c0_i32_0 = arith.constant 0 : i32
    return %c0_i32, %arg0 : i32, i32
  }
  func.func @transform_5(%arg0: i32) -> (i32, i32, i32) {
    %c0_i32 = arith.constant 0 : i32
    %c0_i32_0 = arith.constant 0 : i32
    %c0_i32_1 = arith.constant 0 : i32
    return %arg0, %c0_i32, %c0_i32_0 : i32, i32, i32
  }
}

</mosaic_0001>

<llo_original>
// kernel: tpu_custom_call.1
$region0: #{tpu_custom_call.1}
  #allocation0 [shape = 'u32[]', space=smem, size = 0x4, offset = 0x4, fixed_abs, tag = 'smem constant byte address 0x4 - core index']
  #allocation1 [shape = 'u32[144,128]{1,0:T(1,128)}', space=vmem, size = 0x12000, scoped, tag = 'internal scratch']
  %s0 = inlined_call_operand.vmem [shape: f32[8,5,2], index: 0, kind: input, shape index: {}]
  %s1 = inlined_call_operand.vmem [shape: f32[5,5], index: 1, kind: input, shape index: {}]
  %s2 = inlined_call_operand.vmem [shape: s32[8,2], index: 2, kind: input, shape index: {}]
  %s3 = inlined_call_operand.vmem [shape: s32[8,2], index: 3, kind: input, shape index: {}]
  %s4 = inlined_call_operand.vmem [shape: s32[1,2], index: 4, kind: input, shape index: {}]
  %s5 = inlined_call_operand.hbm [shape: f32[1,8,128], index: 5, kind: output, shape index: {}]
  %s6 = sld [smem:[#allocation0]]
  $region30: #{tpu_custom_call.1} parent=0
    _
  %s8 = ssub.s32 1, %s6
  %s9 = scalar_select 0, %s8, %s6
  $region1: #{tpu_custom_call.1} parent=0
    #allocation2 [shape = 'u8[4096]{0}', space=vmem, size = 0x1000, scoped, tag = 'output window, operand 0, single buffered']
    #allocation3 [shape = 's32[1]{0}', space=sflag, size = 0x4, scoped, tag = 'scoped memory for tpu_custom_call.1']
    %10 = vsyncpa [#allocation3], 0
    // Predicated region
    $region2: #{tpu_custom_call.1} parent=1 // pred_check
      _
    $region3: #{tpu_custom_call.1} parent=1 // pred_check_branch
      %12 = sbr.rel (0) target = $region5
    $region4: #{tpu_custom_call.1} parent=1 // pred_region
      _
    $region5: #{tpu_custom_call.1} parent=1 // pred_fallthru
      _
    // Predicated region
    $region6: #{tpu_custom_call.1} parent=1 // pred_check
      _
    $region7: #{tpu_custom_call.1} parent=1 // pred_check_branch
      %14 = sbr.rel (0) target = $region9
    $region8: #{tpu_custom_call.1} parent=1 // pred_region
      _
    $region9: #{tpu_custom_call.1} parent=1 // pred_fallthru
      _
    // Predicated region
    $region10: #{tpu_custom_call.1} parent=1 // pred_check
      _
    $region11: #{tpu_custom_call.1} parent=1 // pred_check_branch
      %16 = sbr.rel (0) target = $region13
    $region12: #{tpu_custom_call.1} parent=1 // pred_region
      _
    $region13: #{tpu_custom_call.1} parent=1 // pred_fallthru
      _
    // Predicated region
    $region14: #{tpu_custom_call.1} parent=1 // pred_check
      _
    $region15: #{tpu_custom_call.1} parent=1 // pred_check_branch
      %18 = sbr.rel (0) target = $region17
    $region16: #{tpu_custom_call.1} parent=1 // pred_region
      _
    $region17: #{tpu_custom_call.1} parent=1 // pred_fallthru
      _
    // Predicated region
    $region18: #{tpu_custom_call.1} parent=1 // pred_check
      _
    $region19: #{tpu_custom_call.1} parent=1 // pred_check_branch
      %20 = sbr.rel (0) target = $region21
    $region20: #{tpu_custom_call.1} parent=1 // pred_region
      _
    $region21: #{tpu_custom_call.1} parent=1 // pred_fallthru
      _
    %v21 = vld [vmem:[%s0] sm:$0x1f]
    %v22 = vld [vmem:[%s0 + $0x8] sm:$0x1f]
    %v23 = vld [vmem:[%s0 + $0x10] sm:$0x1f]
    %v24 = vld [vmem:[%s0 + $0x18] sm:$0x1f]
    %v25 = vld [vmem:[%s0 + $0x20] sm:$0x1f]
    %v26 = vld [vmem:[%s0 + $0x28] sm:$0x1f]
    %v27 = vld [vmem:[%s0 + $0x30] sm:$0x1f]
    %v28 = vld [vmem:[%s0 + $0x38] sm:$0x1f]
    %v29 = vld [vmem:[%s1] sm:$0x1f]
    %v30 = vld [vmem:[%s2] sm:$0xff]
    %v31 = vld [vmem:[%s3] sm:$0xff]
    %v32 = vld [vmem:[%s4] sm:$0x1]
    %vm33 = vcmp.ge.s32.totalorder %v32, 1
    %v34 = vlaneseq
    %v35 = vshrl.u32 %v34, 7
    %v36 = vsub.s32 0, %v35
    %v37 = vrot.slane %v29, %v36
    %39 = vbcast.lane.b32.xlu0 %v37, 256
    %v40 = vpop.permute.xlu0 %39
    %v41 = vlaneseq
    %v42 = vshrl.u32 %v41, 7
    %v43 = vsub.s32 1, %v42
    %v44 = vrot.slane %v29, %v43
    %46 = vbcast.lane.b32.xlu0 %v44, 256
    %v47 = vpop.permute.xlu0 %46
    %v48 = vlaneseq
    %v49 = vshrl.u32 %v48, 7
    %v50 = vsub.s32 2, %v49
    %v51 = vrot.slane %v29, %v50
    %53 = vbcast.lane.b32.xlu0 %v51, 256
    %v54 = vpop.permute.xlu0 %53
    %v55 = vlaneseq
    %v56 = vshrl.u32 %v55, 7
    %v57 = vsub.s32 3, %v56
    %v58 = vrot.slane %v29, %v57
    %60 = vbcast.lane.b32.xlu0 %v58, 256
    %v61 = vpop.permute.xlu0 %60
    %v62 = vlaneseq
    %v63 = vshrl.u32 %v62, 7
    %v64 = vsub.s32 4, %v63
    %v65 = vrot.slane %v29, %v64
    %67 = vbcast.lane.b32.xlu0 %v65, 256
    %v68 = vpop.permute.xlu0 %67
    %v69 = vadd.f32 %v21, %v61
    %vm70 = vcmp.eq.s32.totalorder %v32, 1
    %v71 = vsel %vm70, 1, 0
    %v72 = vlaneseq
    %v73 = vshrl.u32 %v72, 7
    %v74 = vsub.s32 0, %v73
    %v75 = vrot.slane %v71, %v74
    %vm76 = vcmp.eq.s32.totalorder %v75, 1
    %v77 = vsel %vm76, %v69, 0.0
    %v79 = vcombine.high %v69, %v69
    %v81 = vunpack.c.l.s4 1966171168
    %v82 = vunpack.c.0.s8 %v81
    %v83 = vlaneseq
    %v84 = vshrl.u32 %v83, 7
    %v85 = vsub.s32 %v82, %v84
    %v86 = vrot.slane %v69, %v85
    %v88 = vunpack.c.l.s4 1966171168
    %v89 = vunpack.c.0.s8 %v88
    %v90 = vlaneseq
    %v91 = vshrl.u32 %v90, 7
    %v92 = vsub.s32 %v89, %v91
    %v93 = vrot.slane %v79, %v92
    %v94 = vcombine.high %v86, %v86
    %v96 = vunpack.c.l.s4 1966171168
    %v97 = vunpack.c.0.s8 %v96
    %v98 = vlaneseq
    %v99 = vshrl.u32 %v98, 7
    %v100 = vsub.s32 %v97, %v99
    %v101 = vrot.slane %v86, %v100
    %v103 = vunpack.c.l.s4 1966171168
    %v104 = vunpack.c.0.s8 %v103
    %v105 = vlaneseq
    %v106 = vshrl.u32 %v105, 7
    %v107 = vsub.s32 %v104, %v106
    %v108 = vrot.slane %v93, %v107
    %v110 = vunpack.c.l.s4 1966171168
    %v111 = vunpack.c.0.s8 %v110
    %v112 = vlaneseq
    %v113 = vshrl.u32 %v112, 7
    %v114 = vsub.s32 %v111, %v113
    %v115 = vrot.slane %v94, %v114
    %v116 = vcombine.high %v101, %v101
    %v117 = vcombine.high %v115, %v115
    %v118 = vlaneseq
    %v119 = vshrl.u32 %v118, 7
    %v120 = vsub.s32 0, %v119
    %v121 = vrot.slane %v101, %v120
    %v122 = vlaneseq
    %v123 = vshrl.u32 %v122, 7
    %v124 = vsub.s32 0, %v123
    %v125 = vrot.slane %v115, %v124
    %v126 = vlaneseq
    %v127 = vshrl.u32 %v126, 7
    %v128 = vsub.s32 0, %v127
    %v129 = vrot.slane %v116, %v128
    %v130 = vlaneseq
    %v131 = vshrl.u32 %v130, 7
    %v132 = vsub.s32 0, %v131
    %v133 = vrot.slane %v117, %v132
    %v134 = vlaneseq
    %v135 = vshrl.u32 %v134, 7
    %v136 = vsub.s32 0, %v135
    %v137 = vrot.slane %v108, %v136
    %v143 = vadd.f32 %v121, %v40
    %v144 = vadd.f32 %v125, %v47
    %v145 = vadd.f32 %v129, %v54
    %v146 = vadd.f32 %v133, %v61
    %v147 = vadd.f32 %v137, %v68
    %v148 = vadd.f32 %v143, %v22
    %v149 = vadd.f32 %v144, %v22
    %v150 = vadd.f32 %v145, %v22
    %v151 = vadd.f32 %v146, %v22
    %v152 = vadd.f32 %v147, %v22
    %vm153 = vcmask 12288
    %v154 = vsel %vm153, %v148, -inf
    %v155 = vsel %vm153, %v149, -inf
    %v156 = vsel %vm153, %v150, -inf
    %v157 = vsel %vm153, %v151, -inf
    %v158 = vsel %vm153, %v152, -inf
    %v159 = vmax.f32 %v154, %v158
    %v160 = vmax.f32 %v159, %v155
    %v161 = vmax.f32 %v156, %v157
    %v162 = vmax.f32 %v160, %v161
    %v163 = vsub.f32 %v148, %v162
    %v164 = vsub.f32 %v149, %v162
    %v165 = vsub.f32 %v150, %v162
    %v166 = vsub.f32 %v151, %v162
    %v167 = vsub.f32 %v152, %v162
    %v168 = vmul.f32 %v163, 1.442695
    %v169 = vpow.pop %v168
    %v170 = vmul.f32 %v164, 1.442695
    %v171 = vpow.pop %v170
    %v172 = vmul.f32 %v165, 1.442695
    %v173 = vpow.pop %v172
    %v174 = vmul.f32 %v166, 1.442695
    %v175 = vpow.pop %v174
    %v176 = vmul.f32 %v167, 1.442695
    %v177 = vpow.pop %v176
    %v178 = vsel %vm153, %v169, 0.0
    %v179 = vsel %vm153, %v171, 0.0
    %v180 = vadd.f32 %v178, %v179
    %v181 = vsel %vm153, %v173, 0.0
    %v182 = vadd.f32 %v180, %v181
    %v183 = vsel %vm153, %v175, 0.0
    %v184 = vadd.f32 %v182, %v183
    %v185 = vsel %vm153, %v177, 0.0
    %v186 = vadd.f32 %v184, %v185
    %v187 = vlog2.pop %v186
    %v188 = vmul.f32 %v187, 0.6931472
    %v189 = vadd.f32 %v162, %v188
    %vm190 = vcmp.eq.s32.totalorder %v32, 2
    %v191 = vsel %vm190, 1, 0
    %v192 = vlaneseq
    %v193 = vshrl.u32 %v192, 7
    %v194 = vsub.s32 0, %v193
    %v195 = vrot.slane %v191, %v194
    %vm196 = vcmp.eq.s32.totalorder %v195, 1
    %v197 = vsel %vm196, %v189, %v77
    %v199 = vcombine.high %v189, %v189
    %v201 = vunpack.c.l.s4 1966171168
    %v202 = vunpack.c.0.s8 %v201
    %v203 = vlaneseq
    %v204 = vshrl.u32 %v203, 7
    %v205 = vsub.s32 %v202, %v204
    %v206 = vrot.slane %v189, %v205
    %v208 = vunpack.c.l.s4 1966171168
    %v209 = vunpack.c.0.s8 %v208
    %v210 = vlaneseq
    %v211 = vshrl.u32 %v210, 7
    %v212 = vsub.s32 %v209, %v211
    %v213 = vrot.slane %v199, %v212
    %v214 = vcombine.high %v206, %v206
    %v216 = vunpack.c.l.s4 1966171168
    %v217 = vunpack.c.0.s8 %v216
    %v218 = vlaneseq
    %v219 = vshrl.u32 %v218, 7
    %v220 = vsub.s32 %v217, %v219
    %v221 = vrot.slane %v206, %v220
    %v223 = vunpack.c.l.s4 1966171168
    %v224 = vunpack.c.0.s8 %v223
    %v225 = vlaneseq
    %v226 = vshrl.u32 %v225, 7
    %v227 = vsub.s32 %v224, %v226
    %v228 = vrot.slane %v213, %v227
    %v230 = vunpack.c.l.s4 1966171168
    %v231 = vunpack.c.0.s8 %v230
    %v232 = vlaneseq
    %v233 = vshrl.u32 %v232, 7
    %v234 = vsub.s32 %v231, %v233
    %v235 = vrot.slane %v214, %v234
    %v236 = vcombine.high %v221, %v221
    %v237 = vcombine.high %v235, %v235
    %v238 = vlaneseq
    %v239 = vshrl.u32 %v238, 7
    %v240 = vsub.s32 0, %v239
    %v241 = vrot.slane %v221, %v240
    %v242 = vlaneseq
    %v243 = vshrl.u32 %v242, 7
    %v244 = vsub.s32 0, %v243
    %v245 = vrot.slane %v235, %v244
    %v246 = vlaneseq
    %v247 = vshrl.u32 %v246, 7
    %v248 = vsub.s32 0, %v247
    %v249 = vrot.slane %v236, %v248
    %v250 = vlaneseq
    %v251 = vshrl.u32 %v250, 7
    %v252 = vsub.s32 0, %v251
    %v253 = vrot.slane %v237, %v252
    %v254 = vlaneseq
    %v255 = vshrl.u32 %v254, 7
    %v256 = vsub.s32 0, %v255
    %v257 = vrot.slane %v228, %v256
    %v263 = vadd.f32 %v241, %v40
    %v264 = vadd.f32 %v245, %v47
    %v265 = vadd.f32 %v249, %v54
    %v266 = vadd.f32 %v253, %v61
    %v267 = vadd.f32 %v257, %v68
    %v268 = vadd.f32 %v263, %v23
    %v269 = vadd.f32 %v264, %v23
    %v270 = vadd.f32 %v265, %v23
    %v271 = vadd.f32 %v266, %v23
    %v272 = vadd.f32 %v267, %v23
    %v273 = vsel %vm153, %v268, -inf
    %v274 = vsel %vm153, %v269, -inf
    %v275 = vsel %vm153, %v270, -inf
    %v276 = vsel %vm153, %v271, -inf
    %v277 = vsel %vm153, %v272, -inf
    %v278 = vmax.f32 %v273, %v277
    %v279 = vmax.f32 %v278, %v274
    %v280 = vmax.f32 %v275, %v276
    %v281 = vmax.f32 %v279, %v280
    %v282 = vsub.f32 %v268, %v281
    %v283 = vsub.f32 %v269, %v281
    %v284 = vsub.f32 %v270, %v281
    %v285 = vsub.f32 %v271, %v281
    %v286 = vsub.f32 %v272, %v281
    %v287 = vmul.f32 %v282, 1.442695
    %v288 = vpow.pop %v287
    %v289 = vmul.f32 %v283, 1.442695
    %v290 = vpow.pop %v289
    %v291 = vmul.f32 %v284, 1.442695
    %v292 = vpow.pop %v291
    %v293 = vmul.f32 %v285, 1.442695
    %v294 = vpow.pop %v293
    %v295 = vmul.f32 %v286, 1.442695
    %v296 = vpow.pop %v295
    %v297 = vsel %vm153, %v288, 0.0
    %v298 = vsel %vm153, %v290, 0.0
    %v299 = vadd.f32 %v297, %v298
    %v300 = vsel %vm153, %v292, 0.0
    %v301 = vadd.f32 %v299, %v300
    %v302 = vsel %vm153, %v294, 0.0
    %v303 = vadd.f32 %v301, %v302
    %v304 = vsel %vm153, %v296, 0.0
    %v305 = vadd.f32 %v303, %v304
    %v306 = vlog2.pop %v305
    %v307 = vmul.f32 %v306, 0.6931472
    %v308 = vadd.f32 %v281, %v307
    %vm309 = vcmp.eq.s32.totalorder %v32, 3
    %v310 = vsel %vm309, 1, 0
    %v311 = vlaneseq
    %v312 = vshrl.u32 %v311, 7
    %v313 = vsub.s32 0, %v312
    %v314 = vrot.slane %v310, %v313
    %vm315 = vcmp.eq.s32.totalorder %v314, 1
    %v316 = vsel %vm315, %v308, %v197
    %v318 = vcombine.high %v308, %v308
    %v320 = vunpack.c.l.s4 1966171168
    %v321 = vunpack.c.0.s8 %v320
    %v322 = vlaneseq
    %v323 = vshrl.u32 %v322, 7
    %v324 = vsub.s32 %v321, %v323
    %v325 = vrot.slane %v308, %v324
    %v327 = vunpack.c.l.s4 1966171168
    %v328 = vunpack.c.0.s8 %v327
    %v329 = vlaneseq
    %v330 = vshrl.u32 %v329, 7
    %v331 = vsub.s32 %v328, %v330
    %v332 = vrot.slane %v318, %v331
    %v333 = vcombine.high %v325, %v325
    %v335 = vunpack.c.l.s4 1966171168
    %v336 = vunpack.c.0.s8 %v335
    %v337 = vlaneseq
    %v338 = vshrl.u32 %v337, 7
    %v339 = vsub.s32 %v336, %v338
    %v340 = vrot.slane %v325, %v339
    %v342 = vunpack.c.l.s4 1966171168
    %v343 = vunpack.c.0.s8 %v342
    %v344 = vlaneseq
    %v345 = vshrl.u32 %v344, 7
    %v346 = vsub.s32 %v343, %v345
    %v347 = vrot.slane %v332, %v346
    %v349 = vunpack.c.l.s4 1966171168
    %v350 = vunpack.c.0.s8 %v349
    %v351 = vlaneseq
    %v352 = vshrl.u32 %v351, 7
    %v353 = vsub.s32 %v350, %v352
    %v354 = vrot.slane %v333, %v353
    %v355 = vcombine.high %v340, %v340
    %v356 = vcombine.high %v354, %v354
    %v357 = vlaneseq
    %v358 = vshrl.u32 %v357, 7
    %v359 = vsub.s32 0, %v358
    %v360 = vrot.slane %v340, %v359
    %v361 = vlaneseq
    %v362 = vshrl.u32 %v361, 7
    %v363 = vsub.s32 0, %v362
    %v364 = vrot.slane %v354, %v363
    %v365 = vlaneseq
    %v366 = vshrl.u32 %v365, 7
    %v367 = vsub.s32 0, %v366
    %v368 = vrot.slane %v355, %v367
    %v369 = vlaneseq
    %v370 = vshrl.u32 %v369, 7
    %v371 = vsub.s32 0, %v370
    %v372 = vrot.slane %v356, %v371
    %v373 = vlaneseq
    %v374 = vshrl.u32 %v373, 7
    %v375 = vsub.s32 0, %v374
    %v376 = vrot.slane %v347, %v375
    %v382 = vadd.f32 %v360, %v40
    %v383 = vadd.f32 %v364, %v47
    %v384 = vadd.f32 %v368, %v54
    %v385 = vadd.f32 %v372, %v61
    %v386 = vadd.f32 %v376, %v68
    %v387 = vadd.f32 %v382, %v24
    %v388 = vadd.f32 %v383, %v24
    %v389 = vadd.f32 %v384, %v24
    %v390 = vadd.f32 %v385, %v24
    %v391 = vadd.f32 %v386, %v24
    %v392 = vsel %vm153, %v387, -inf
    %v393 = vsel %vm153, %v388, -inf
    %v394 = vsel %vm153, %v389, -inf
    %v395 = vsel %vm153, %v390, -inf
    %v396 = vsel %vm153, %v391, -inf
    %v397 = vmax.f32 %v392, %v396
    %v398 = vmax.f32 %v397, %v393
    %v399 = vmax.f32 %v394, %v395
    %v400 = vmax.f32 %v398, %v399
    %v401 = vsub.f32 %v387, %v400
    %v402 = vsub.f32 %v388, %v400
    %v403 = vsub.f32 %v389, %v400
    %v404 = vsub.f32 %v390, %v400
    %v405 = vsub.f32 %v391, %v400
    %v406 = vmul.f32 %v401, 1.442695
    %v407 = vpow.pop %v406
    %v408 = vmul.f32 %v402, 1.442695
    %v409 = vpow.pop %v408
    %v410 = vmul.f32 %v403, 1.442695
    %v411 = vpow.pop %v410
    %v412 = vmul.f32 %v404, 1.442695
    %v413 = vpow.pop %v412
    %v414 = vmul.f32 %v405, 1.442695
    %v415 = vpow.pop %v414
    %v416 = vsel %vm153, %v407, 0.0
    %v417 = vsel %vm153, %v409, 0.0
    %v418 = vadd.f32 %v416, %v417
    %v419 = vsel %vm153, %v411, 0.0
    %v420 = vadd.f32 %v418, %v419
    %v421 = vsel %vm153, %v413, 0.0
    %v422 = vadd.f32 %v420, %v421
    %v423 = vsel %vm153, %v415, 0.0
    %v424 = vadd.f32 %v422, %v423
    %v425 = vlog2.pop %v424
    %v426 = vmul.f32 %v425, 0.6931472
    %v427 = vadd.f32 %v400, %v426
    %vm428 = vcmp.eq.s32.totalorder %v32, 4
    %v429 = vsel %vm428, 1, 0
    %v430 = vlaneseq
    %v431 = vshrl.u32 %v430, 7
    %v432 = vsub.s32 0, %v431
    %v433 = vrot.slane %v429, %v432
    %vm434 = vcmp.eq.s32.totalorder %v433, 1
    %v435 = vsel %vm434, %v427, %v316
    %v437 = vcombine.high %v427, %v427
    %v439 = vunpack.c.l.s4 1966171168
    %v440 = vunpack.c.0.s8 %v439
    %v441 = vlaneseq
    %v442 = vshrl.u32 %v441, 7
    %v443 = vsub.s32 %v440, %v442
    %v444 = vrot.slane %v427, %v443
    %v446 = vunpack.c.l.s4 1966171168
    %v447 = vunpack.c.0.s8 %v446
    %v448 = vlaneseq
    %v449 = vshrl.u32 %v448, 7
    %v450 = vsub.s32 %v447, %v449
    %v451 = vrot.slane %v437, %v450
    %v452 = vcombine.high %v444, %v444
    %v454 = vunpack.c.l.s4 1966171168
    %v455 = vunpack.c.0.s8 %v454
    %v456 = vlaneseq
    %v457 = vshrl.u32 %v456, 7
    %v458 = vsub.s32 %v455, %v457
    %v459 = vrot.slane %v444, %v458
    %v461 = vunpack.c.l.s4 1966171168
    %v462 = vunpack.c.0.s8 %v461
    %v463 = vlaneseq
    %v464 = vshrl.u32 %v463, 7
    %v465 = vsub.s32 %v462, %v464
    %v466 = vrot.slane %v451, %v465
    %v468 = vunpack.c.l.s4 1966171168
    %v469 = vunpack.c.0.s8 %v468
    %v470 = vlaneseq
    %v471 = vshrl.u32 %v470, 7
    %v472 = vsub.s32 %v469, %v471
    %v473 = vrot.slane %v452, %v472
    %v474 = vcombine.high %v459, %v459
    %v475 = vcombine.high %v473, %v473
    %v476 = vlaneseq
    %v477 = vshrl.u32 %v476, 7
    %v478 = vsub.s32 0, %v477
    %v479 = vrot.slane %v459, %v478
    %v480 = vlaneseq
    %v481 = vshrl.u32 %v480, 7
    %v482 = vsub.s32 0, %v481
    %v483 = vrot.slane %v473, %v482
    %v484 = vlaneseq
    %v485 = vshrl.u32 %v484, 7
    %v486 = vsub.s32 0, %v485
    %v487 = vrot.slane %v474, %v486
    %v488 = vlaneseq
    %v489 = vshrl.u32 %v488, 7
    %v490 = vsub.s32 0, %v489
    %v491 = vrot.slane %v475, %v490
    %v492 = vlaneseq
    %v493 = vshrl.u32 %v492, 7
    %v494 = vsub.s32 0, %v493
    %v495 = vrot.slane %v466, %v494
    %v501 = vadd.f32 %v479, %v40
    %v502 = vadd.f32 %v483, %v47
    %v503 = vadd.f32 %v487, %v54
    %v504 = vadd.f32 %v491, %v61
    %v505 = vadd.f32 %v495, %v68
    %v506 = vadd.f32 %v501, %v25
    %v507 = vadd.f32 %v502, %v25
    %v508 = vadd.f32 %v503, %v25
    %v509 = vadd.f32 %v504, %v25
    %v510 = vadd.f32 %v505, %v25
    %v511 = vsel %vm153, %v506, -inf
    %v512 = vsel %vm153, %v507, -inf
    %v513 = vsel %vm153, %v508, -inf
    %v514 = vsel %vm153, %v509, -inf
    %v515 = vsel %vm153, %v510, -inf
    %v516 = vmax.f32 %v511, %v515
    %v517 = vmax.f32 %v516, %v512
    %v518 = vmax.f32 %v513, %v514
    %v519 = vmax.f32 %v517, %v518
    %v520 = vsub.f32 %v506, %v519
    %v521 = vsub.f32 %v507, %v519
    %v522 = vsub.f32 %v508, %v519
    %v523 = vsub.f32 %v509, %v519
    %v524 = vsub.f32 %v510, %v519
    %v525 = vmul.f32 %v520, 1.442695
    %v526 = vpow.pop %v525
    %v527 = vmul.f32 %v521, 1.442695
    %v528 = vpow.pop %v527
    %v529 = vmul.f32 %v522, 1.442695
    %v530 = vpow.pop %v529
    %v531 = vmul.f32 %v523, 1.442695
    %v532 = vpow.pop %v531
    %v533 = vmul.f32 %v524, 1.442695
    %v534 = vpow.pop %v533
    %v535 = vsel %vm153, %v526, 0.0
    %v536 = vsel %vm153, %v528, 0.0
    %v537 = vadd.f32 %v535, %v536
    %v538 = vsel %vm153, %v530, 0.0
    %v539 = vadd.f32 %v537, %v538
    %v540 = vsel %vm153, %v532, 0.0
    %v541 = vadd.f32 %v539, %v540
    %v542 = vsel %vm153, %v534, 0.0
    %v543 = vadd.f32 %v541, %v542
    %v544 = vlog2.pop %v543
    %v545 = vmul.f32 %v544, 0.6931472
    %v546 = vadd.f32 %v519, %v545
    %vm547 = vcmp.eq.s32.totalorder %v32, 5
    %v548 = vsel %vm547, 1, 0
    %v549 = vlaneseq
    %v550 = vshrl.u32 %v549, 7
    %v551 = vsub.s32 0, %v550
    %v552 = vrot.slane %v548, %v551
    %vm553 = vcmp.eq.s32.totalorder %v552, 1
    %v554 = vsel %vm553, %v546, %v435
    %v556 = vcombine.high %v546, %v546
    %v558 = vunpack.c.l.s4 1966171168
    %v559 = vunpack.c.0.s8 %v558
    %v560 = vlaneseq
    %v561 = vshrl.u32 %v560, 7
    %v562 = vsub.s32 %v559, %v561
    %v563 = vrot.slane %v546, %v562
    %v565 = vunpack.c.l.s4 1966171168
    %v566 = vunpack.c.0.s8 %v565
    %v567 = vlaneseq
    %v568 = vshrl.u32 %v567, 7
    %v569 = vsub.s32 %v566, %v568
    %v570 = vrot.slane %v556, %v569
    %v571 = vcombine.high %v563, %v563
    %v573 = vunpack.c.l.s4 1966171168
    %v574 = vunpack.c.0.s8 %v573
    %v575 = vlaneseq
    %v576 = vshrl.u32 %v575, 7
    %v577 = vsub.s32 %v574, %v576
    %v578 = vrot.slane %v563, %v577
    %v580 = vunpack.c.l.s4 1966171168
    %v581 = vunpack.c.0.s8 %v580
    %v582 = vlaneseq
    %v583 = vshrl.u32 %v582, 7
    %v584 = vsub.s32 %v581, %v583
    %v585 = vrot.slane %v570, %v584
    %v587 = vunpack.c.l.s4 1966171168
    %v588 = vunpack.c.0.s8 %v587
    %v589 = vlaneseq
    %v590 = vshrl.u32 %v589, 7
    %v591 = vsub.s32 %v588, %v590
    %v592 = vrot.slane %v571, %v591
    %v593 = vcombine.high %v578, %v578
    %v594 = vcombine.high %v592, %v592
    %v595 = vlaneseq
    %v596 = vshrl.u32 %v595, 7
    %v597 = vsub.s32 0, %v596
    %v598 = vrot.slane %v578, %v597
    %v599 = vlaneseq
    %v600 = vshrl.u32 %v599, 7
    %v601 = vsub.s32 0, %v600
    %v602 = vrot.slane %v592, %v601
    %v603 = vlaneseq
    %v604 = vshrl.u32 %v603, 7
    %v605 = vsub.s32 0, %v604
    %v606 = vrot.slane %v593, %v605
    %v607 = vlaneseq
    %v608 = vshrl.u32 %v607, 7
    %v609 = vsub.s32 0, %v608
    %v610 = vrot.slane %v594, %v609
    %v611 = vlaneseq
    %v612 = vshrl.u32 %v611, 7
    %v613 = vsub.s32 0, %v612
    %v614 = vrot.slane %v585, %v613
    %v620 = vadd.f32 %v598, %v40
    %v621 = vadd.f32 %v602, %v47
    %v622 = vadd.f32 %v606, %v54
    %v623 = vadd.f32 %v610, %v61
    %v624 = vadd.f32 %v614, %v68
    %v625 = vadd.f32 %v620, %v26
    %v626 = vadd.f32 %v621, %v26
    %v627 = vadd.f32 %v622, %v26
    %v628 = vadd.f32 %v623, %v26
    %v629 = vadd.f32 %v624, %v26
    %v630 = vsel %vm153, %v625, -inf
    %v631 = vsel %vm153, %v626, -inf
    %v632 = vsel %vm153, %v627, -inf
    %v633 = vsel %vm153, %v628, -inf
    %v634 = vsel %vm153, %v629, -inf
    %v635 = vmax.f32 %v630, %v634
    %v636 = vmax.f32 %v635, %v631
    %v637 = vmax.f32 %v632, %v633
    %v638 = vmax.f32 %v636, %v637
    %v639 = vsub.f32 %v625, %v638
    %v640 = vsub.f32 %v626, %v638
    %v641 = vsub.f32 %v627, %v638
    %v642 = vsub.f32 %v628, %v638
    %v643 = vsub.f32 %v629, %v638
    %v644 = vmul.f32 %v639, 1.442695
    %v645 = vpow.pop %v644
    %v646 = vmul.f32 %v640, 1.442695
    %v647 = vpow.pop %v646
    %v648 = vmul.f32 %v641, 1.442695
    %v649 = vpow.pop %v648
    %v650 = vmul.f32 %v642, 1.442695
    %v651 = vpow.pop %v650
    %v652 = vmul.f32 %v643, 1.442695
    %v653 = vpow.pop %v652
    %v654 = vsel %vm153, %v645, 0.0
    %v655 = vsel %vm153, %v647, 0.0
    %v656 = vadd.f32 %v654, %v655
    %v657 = vsel %vm153, %v649, 0.0
    %v658 = vadd.f32 %v656, %v657
    %v659 = vsel %vm153, %v651, 0.0
    %v660 = vadd.f32 %v658, %v659
    %v661 = vsel %vm153, %v653, 0.0
    %v662 = vadd.f32 %v660, %v661
    %v663 = vlog2.pop %v662
    %v664 = vmul.f32 %v663, 0.6931472
    %v665 = vadd.f32 %v638, %v664
    %vm666 = vcmp.eq.s32.totalorder %v32, 6
    %v667 = vsel %vm666, 1, 0
    %v668 = vlaneseq
    %v669 = vshrl.u32 %v668, 7
    %v670 = vsub.s32 0, %v669
    %v671 = vrot.slane %v667, %v670
    %vm672 = vcmp.eq.s32.totalorder %v671, 1
    %v673 = vsel %vm672, %v665, %v554
    %v675 = vcombine.high %v665, %v665
    %v677 = vunpack.c.l.s4 1966171168
    %v678 = vunpack.c.0.s8 %v677
    %v679 = vlaneseq
    %v680 = vshrl.u32 %v679, 7
    %v681 = vsub.s32 %v678, %v680
    %v682 = vrot.slane %v665, %v681
    %v684 = vunpack.c.l.s4 1966171168
    %v685 = vunpack.c.0.s8 %v684
    %v686 = vlaneseq
    %v687 = vshrl.u32 %v686, 7
    %v688 = vsub.s32 %v685, %v687
    %v689 = vrot.slane %v675, %v688
    %v690 = vcombine.high %v682, %v682
    %v692 = vunpack.c.l.s4 1966171168
    %v693 = vunpack.c.0.s8 %v692
    %v694 = vlaneseq
    %v695 = vshrl.u32 %v694, 7
    %v696 = vsub.s32 %v693, %v695
    %v697 = vrot.slane %v682, %v696
    %v699 = vunpack.c.l.s4 1966171168
    %v700 = vunpack.c.0.s8 %v699
    %v701 = vlaneseq
    %v702 = vshrl.u32 %v701, 7
    %v703 = vsub.s32 %v700, %v702
    %v704 = vrot.slane %v689, %v703
    %v706 = vunpack.c.l.s4 1966171168
    %v707 = vunpack.c.0.s8 %v706
    %v708 = vlaneseq
    %v709 = vshrl.u32 %v708, 7
    %v710 = vsub.s32 %v707, %v709
    %v711 = vrot.slane %v690, %v710
    %v712 = vcombine.high %v697, %v697
    %v713 = vcombine.high %v711, %v711
    %v714 = vlaneseq
    %v715 = vshrl.u32 %v714, 7
    %v716 = vsub.s32 0, %v715
    %v717 = vrot.slane %v697, %v716
    %v718 = vlaneseq
    %v719 = vshrl.u32 %v718, 7
    %v720 = vsub.s32 0, %v719
    %v721 = vrot.slane %v711, %v720
    %v722 = vlaneseq
    %v723 = vshrl.u32 %v722, 7
    %v724 = vsub.s32 0, %v723
    %v725 = vrot.slane %v712, %v724
    %v726 = vlaneseq
    %v727 = vshrl.u32 %v726, 7
    %v728 = vsub.s32 0, %v727
    %v729 = vrot.slane %v713, %v728
    %v730 = vlaneseq
    %v731 = vshrl.u32 %v730, 7
    %v732 = vsub.s32 0, %v731
    %v733 = vrot.slane %v704, %v732
    %v739 = vadd.f32 %v717, %v40
    %v740 = vadd.f32 %v721, %v47
    %v741 = vadd.f32 %v725, %v54
    %v742 = vadd.f32 %v729, %v61
    %v743 = vadd.f32 %v733, %v68
    %v744 = vadd.f32 %v739, %v27
    %v745 = vadd.f32 %v740, %v27
    %v746 = vadd.f32 %v741, %v27
    %v747 = vadd.f32 %v742, %v27
    %v748 = vadd.f32 %v743, %v27
    %v749 = vsel %vm153, %v744, -inf
    %v750 = vsel %vm153, %v745, -inf
    %v751 = vsel %vm153, %v746, -inf
    %v752 = vsel %vm153, %v747, -inf
    %v753 = vsel %vm153, %v748, -inf
    %v754 = vmax.f32 %v749, %v753
    %v755 = vmax.f32 %v754, %v750
    %v756 = vmax.f32 %v751, %v752
    %v757 = vmax.f32 %v755, %v756
    %v758 = vsub.f32 %v744, %v757
    %v759 = vsub.f32 %v745, %v757
    %v760 = vsub.f32 %v746, %v757
    %v761 = vsub.f32 %v747, %v757
    %v762 = vsub.f32 %v748, %v757
    %v763 = vmul.f32 %v758, 1.442695
    %v764 = vpow.pop %v763
    %v765 = vmul.f32 %v759, 1.442695
    %v766 = vpow.pop %v765
    %v767 = vmul.f32 %v760, 1.442695
    %v768 = vpow.pop %v767
    %v769 = vmul.f32 %v761, 1.442695
    %v770 = vpow.pop %v769
    %v771 = vmul.f32 %v762, 1.442695
    %v772 = vpow.pop %v771
    %v773 = vsel %vm153, %v764, 0.0
    %v774 = vsel %vm153, %v766, 0.0
    %v775 = vadd.f32 %v773, %v774
    %v776 = vsel %vm153, %v768, 0.0
    %v777 = vadd.f32 %v775, %v776
    %v778 = vsel %vm153, %v770, 0.0
    %v779 = vadd.f32 %v777, %v778
    %v780 = vsel %vm153, %v772, 0.0
    %v781 = vadd.f32 %v779, %v780
    %v782 = vlog2.pop %v781
    %v783 = vmul.f32 %v782, 0.6931472
    %v784 = vadd.f32 %v757, %v783
    %vm785 = vcmp.eq.s32.totalorder %v32, 7
    %v786 = vsel %vm785, 1, 0
    %v787 = vlaneseq
    %v788 = vshrl.u32 %v787, 7
    %v789 = vsub.s32 0, %v788
    %v790 = vrot.slane %v786, %v789
    %vm791 = vcmp.eq.s32.totalorder %v790, 1
    %v792 = vsel %vm791, %v784, %v673
    %v794 = vcombine.high %v784, %v784
    %v796 = vunpack.c.l.s4 1966171168
    %v797 = vunpack.c.0.s8 %v796
    %v798 = vlaneseq
    %v799 = vshrl.u32 %v798, 7
    %v800 = vsub.s32 %v797, %v799
    %v801 = vrot.slane %v784, %v800
    %v803 = vunpack.c.l.s4 1966171168
    %v804 = vunpack.c.0.s8 %v803
    %v805 = vlaneseq
    %v806 = vshrl.u32 %v805, 7
    %v807 = vsub.s32 %v804, %v806
    %v808 = vrot.slane %v794, %v807
    %v809 = vcombine.high %v801, %v801
    %v811 = vunpack.c.l.s4 1966171168
    %v812 = vunpack.c.0.s8 %v811
    %v813 = vlaneseq
    %v814 = vshrl.u32 %v813, 7
    %v815 = vsub.s32 %v812, %v814
    %v816 = vrot.slane %v801, %v815
    %v818 = vunpack.c.l.s4 1966171168
    %v819 = vunpack.c.0.s8 %v818
    %v820 = vlaneseq
    %v821 = vshrl.u32 %v820, 7
    %v822 = vsub.s32 %v819, %v821
    %v823 = vrot.slane %v808, %v822
    %v825 = vunpack.c.l.s4 1966171168
    %v826 = vunpack.c.0.s8 %v825
    %v827 = vlaneseq
    %v828 = vshrl.u32 %v827, 7
    %v829 = vsub.s32 %v826, %v828
    %v830 = vrot.slane %v809, %v829
    %v831 = vcombine.high %v816, %v816
    %v832 = vcombine.high %v830, %v830
    %v833 = vlaneseq
    %v834 = vshrl.u32 %v833, 7
    %v835 = vsub.s32 0, %v834
    %v836 = vrot.slane %v816, %v835
    %v837 = vlaneseq
    %v838 = vshrl.u32 %v837, 7
    %v839 = vsub.s32 0, %v838
    %v840 = vrot.slane %v830, %v839
    %v841 = vlaneseq
    %v842 = vshrl.u32 %v841, 7
    %v843 = vsub.s32 0, %v842
    %v844 = vrot.slane %v831, %v843
    %v845 = vlaneseq
    %v846 = vshrl.u32 %v845, 7
    %v847 = vsub.s32 0, %v846
    %v848 = vrot.slane %v832, %v847
    %v849 = vlaneseq
    %v850 = vshrl.u32 %v849, 7
    %v851 = vsub.s32 0, %v850
    %v852 = vrot.slane %v823, %v851
    %v858 = vadd.f32 %v836, %v40
    %v859 = vadd.f32 %v840, %v47
    %v860 = vadd.f32 %v844, %v54
    %v861 = vadd.f32 %v848, %v61
    %v862 = vadd.f32 %v852, %v68
    %v863 = vadd.f32 %v858, %v28
    %v864 = vadd.f32 %v859, %v28
    %v865 = vadd.f32 %v860, %v28
    %v866 = vadd.f32 %v861, %v28
    %v867 = vadd.f32 %v862, %v28
    %v868 = vsel %vm153, %v863, -inf
    %v869 = vsel %vm153, %v864, -inf
    %v870 = vsel %vm153, %v865, -inf
    %v871 = vsel %vm153, %v866, -inf
    %v872 = vsel %vm153, %v867, -inf
    %v873 = vmax.f32 %v868, %v872
    %v874 = vmax.f32 %v873, %v869
    %v875 = vmax.f32 %v870, %v871
    %v876 = vmax.f32 %v874, %v875
    %v877 = vsub.f32 %v863, %v876
    %v878 = vsub.f32 %v864, %v876
    %v879 = vsub.f32 %v865, %v876
    %v880 = vsub.f32 %v866, %v876
    %v881 = vsub.f32 %v867, %v876
    %v882 = vmul.f32 %v877, 1.442695
    %v883 = vpow.pop %v882
    %v884 = vmul.f32 %v878, 1.442695
    %v885 = vpow.pop %v884
    %v886 = vmul.f32 %v879, 1.442695
    %v887 = vpow.pop %v886
    %v888 = vmul.f32 %v880, 1.442695
    %v889 = vpow.pop %v888
    %v890 = vmul.f32 %v881, 1.442695
    %v891 = vpow.pop %v890
    %v892 = vsel %vm153, %v883, 0.0
    %v893 = vsel %vm153, %v885, 0.0
    %v894 = vadd.f32 %v892, %v893
    %v895 = vsel %vm153, %v887, 0.0
    %v896 = vadd.f32 %v894, %v895
    %v897 = vsel %vm153, %v889, 0.0
    %v898 = vadd.f32 %v896, %v897
    %v899 = vsel %vm153, %v891, 0.0
    %v900 = vadd.f32 %v898, %v899
    %v901 = vlog2.pop %v900
    %v902 = vmul.f32 %v901, 0.6931472
    %v903 = vadd.f32 %v876, %v902
    %vm904 = vcmp.eq.s32.totalorder %v32, 8
    %v905 = vsel %vm904, 1, 0
    %v906 = vlaneseq
    %v907 = vshrl.u32 %v906, 7
    %v908 = vsub.s32 0, %v907
    %v909 = vrot.slane %v905, %v908
    %vm910 = vcmp.eq.s32.totalorder %v909, 1
    %v911 = vsel %vm910, %v903, %v792
    %913 = vset.pattern.permute.xlu0 4
    %914 = vperm.xlu0 %913, %v29
    %v915 = vpop.permute.xlu0 %914
    %v917 = vadd.f32 %v911, %v915
    %v918 = vsel %vm153, %v917, -inf
    %v919 = vrot.slane %v918, 4
    %v920 = vmax.f32 %v918, %v919
    %v921 = vrot.slane %v920, 2
    %v922 = vmax.f32 %v920, %v921
    %v923 = vrot.slane %v922, 1
    %v924 = vmax.f32 %v922, %v923
    %v925 = vsub.f32 %v917, %v924
    %v926 = vmul.f32 %v925, 1.442695
    %v927 = vpow.pop %v926
    %v928 = vsel %vm153, %v927, 0.0
    %v929 = vrot.slane %v928, 4
    %v930 = vadd.f32 %v928, %v929
    %v931 = vrot.slane %v930, 2
    %v932 = vadd.f32 %v930, %v931
    %v933 = vrot.slane %v932, 1
    %v934 = vadd.f32 %v932, %v933
    %v935 = vlog2.pop %v934
    %v936 = vmul.f32 %v935, 0.6931472
    %v937 = vadd.f32 %v924, %v936
    %v938 = vsel %vm33, %v937, 0.0
    %vm939 = vcmask 8192
    %v940 = vsel %vm939, %v938, 0.0
    %941 = vadd.xlane.f32.xlu0 %v940
    %v942 = vpop.xlane.xlu0 %941
    %v943 = vrot.slane %v942, 4
    %v944 = vadd.f32 %v942, %v943
    %v945 = vrot.slane %v944, 2
    %v946 = vadd.f32 %v944, %v945
    %v947 = vrot.slane %v946, 1
    %v948 = vadd.f32 %v946, %v947
    %s949 = vtos %v948
    %v950 = vlaneseq
    %v951 = vshrl.u32 %v950, 7
    %v952 = vcombine.high %v30, %v30
    %v954 = vunpack.c.l.s4 1966171168
    %v955 = vunpack.c.0.s8 %v954
    %v956 = vlaneseq
    %v957 = vshrl.u32 %v956, 7
    %v958 = vsub.s32 %v955, %v957
    %v959 = vrot.slane %v30, %v958
    %v961 = vunpack.c.l.s4 1966171168
    %v962 = vunpack.c.0.s8 %v961
    %v963 = vlaneseq
    %v964 = vshrl.u32 %v963, 7
    %v965 = vsub.s32 %v962, %v964
    %v966 = vrot.slane %v952, %v965
    %v967 = vcombine.high %v959, %v959
    %v968 = vcombine.high %v966, %v966
    %v970 = vunpack.c.l.s4 1966171168
    %v971 = vunpack.c.0.s8 %v970
    %v972 = vlaneseq
    %v973 = vshrl.u32 %v972, 7
    %v974 = vsub.s32 %v971, %v973
    %v975 = vrot.slane %v959, %v974
    %v977 = vunpack.c.l.s4 1966171168
    %v978 = vunpack.c.0.s8 %v977
    %v979 = vlaneseq
    %v980 = vshrl.u32 %v979, 7
    %v981 = vsub.s32 %v978, %v980
    %v982 = vrot.slane %v966, %v981
    %v984 = vunpack.c.l.s4 1966171168
    %v985 = vunpack.c.0.s8 %v984
    %v986 = vlaneseq
    %v987 = vshrl.u32 %v986, 7
    %v988 = vsub.s32 %v985, %v987
    %v989 = vrot.slane %v967, %v988
    %v991 = vunpack.c.l.s4 1966171168
    %v992 = vunpack.c.0.s8 %v991
    %v993 = vlaneseq
    %v994 = vshrl.u32 %v993, 7
    %v995 = vsub.s32 %v992, %v994
    %v996 = vrot.slane %v968, %v995
    %v997 = vcombine.high %v975, %v975
    %v998 = vcombine.high %v982, %v982
    %v999 = vcombine.high %v989, %v989
    %v1000 = vcombine.high %v996, %v996
    %v1001 = vlaneseq
    %v1002 = vshrl.u32 %v1001, 7
    %v1003 = vsub.s32 0, %v1002
    %v1004 = vrot.slane %v975, %v1003
    %v1005 = vlaneseq
    %v1006 = vshrl.u32 %v1005, 7
    %v1007 = vsub.s32 0, %v1006
    %v1008 = vrot.slane %v989, %v1007
    %v1009 = vlaneseq
    %v1010 = vshrl.u32 %v1009, 7
    %v1011 = vsub.s32 0, %v1010
    %v1012 = vrot.slane %v997, %v1011
    %v1013 = vlaneseq
    %v1014 = vshrl.u32 %v1013, 7
    %v1015 = vsub.s32 0, %v1014
    %v1016 = vrot.slane %v999, %v1015
    %v1017 = vlaneseq
    %v1018 = vshrl.u32 %v1017, 7
    %v1019 = vsub.s32 0, %v1018
    %v1020 = vrot.slane %v982, %v1019
    %v1021 = vlaneseq
    %v1022 = vshrl.u32 %v1021, 7
    %v1023 = vsub.s32 0, %v1022
    %v1024 = vrot.slane %v996, %v1023
    %v1025 = vlaneseq
    %v1026 = vshrl.u32 %v1025, 7
    %v1027 = vsub.s32 0, %v1026
    %v1028 = vrot.slane %v998, %v1027
    %v1029 = vlaneseq
    %v1030 = vshrl.u32 %v1029, 7
    %v1031 = vsub.s32 0, %v1030
    %v1032 = vrot.slane %v1000, %v1031
    %vm1033 = vcmp.eq.s32.totalorder %v951, %v1004
    %vm1034 = vcmp.eq.s32.totalorder %v951, %v1008
    %vm1035 = vcmp.eq.s32.totalorder %v951, %v1012
    %vm1036 = vcmp.eq.s32.totalorder %v951, %v1016
    %vm1037 = vcmp.eq.s32.totalorder %v951, %v1020
    %vm1038 = vcmp.eq.s32.totalorder %v951, %v1024
    %vm1039 = vcmp.eq.s32.totalorder %v951, %v1028
    %vm1040 = vcmp.eq.s32.totalorder %v951, %v1032
    %v1041 = vsel %vm1033, %v21, 0.0
    %v1042 = vsel %vm1034, %v22, 0.0
    %v1043 = vsel %vm1035, %v23, 0.0
    %v1044 = vsel %vm1036, %v24, 0.0
    %v1045 = vsel %vm1037, %v25, 0.0
    %v1046 = vsel %vm1038, %v26, 0.0
    %v1047 = vsel %vm1039, %v27, 0.0
    %v1048 = vsel %vm1040, %v28, 0.0
    %v1049 = vsel %vm153, %v1041, 0.0
    %v1050 = vrot.slane %v1049, 4
    %v1051 = vadd.f32 %v1049, %v1050
    %v1052 = vrot.slane %v1051, 2
    %v1053 = vadd.f32 %v1051, %v1052
    %v1054 = vrot.slane %v1053, 1
    %v1055 = vadd.f32 %v1053, %v1054
    %v1056 = vsel %vm153, %v1042, 0.0
    %v1057 = vrot.slane %v1056, 4
    %v1058 = vadd.f32 %v1056, %v1057
    %v1059 = vrot.slane %v1058, 2
    %v1060 = vadd.f32 %v1058, %v1059
    %v1061 = vrot.slane %v1060, 1
    %v1062 = vadd.f32 %v1060, %v1061
    %v1063 = vsel %vm153, %v1043, 0.0
    %v1064 = vrot.slane %v1063, 4
    %v1065 = vadd.f32 %v1063, %v1064
    %v1066 = vrot.slane %v1065, 2
    %v1067 = vadd.f32 %v1065, %v1066
    %v1068 = vrot.slane %v1067, 1
    %v1069 = vadd.f32 %v1067, %v1068
    %v1070 = vsel %vm153, %v1044, 0.0
    %v1071 = vrot.slane %v1070, 4
    %v1072 = vadd.f32 %v1070, %v1071
    %v1073 = vrot.slane %v1072, 2
    %v1074 = vadd.f32 %v1072, %v1073
    %v1075 = vrot.slane %v1074, 1
    %v1076 = vadd.f32 %v1074, %v1075
    %v1077 = vsel %vm153, %v1045, 0.0
    %v1078 = vrot.slane %v1077, 4
    %v1079 = vadd.f32 %v1077, %v1078
    %v1080 = vrot.slane %v1079, 2
    %v1081 = vadd.f32 %v1079, %v1080
    %v1082 = vrot.slane %v1081, 1
    %v1083 = vadd.f32 %v1081, %v1082
    %v1084 = vsel %vm153, %v1046, 0.0
    %v1085 = vrot.slane %v1084, 4
    %v1086 = vadd.f32 %v1084, %v1085
    %v1087 = vrot.slane %v1086, 2
    %v1088 = vadd.f32 %v1086, %v1087
    %v1089 = vrot.slane %v1088, 1
    %v1090 = vadd.f32 %v1088, %v1089
    %v1091 = vsel %vm153, %v1047, 0.0
    %v1092 = vrot.slane %v1091, 4
    %v1093 = vadd.f32 %v1091, %v1092
    %v1094 = vrot.slane %v1093, 2
    %v1095 = vadd.f32 %v1093, %v1094
    %v1096 = vrot.slane %v1095, 1
    %v1097 = vadd.f32 %v1095, %v1096
    %v1098 = vsel %vm153, %v1048, 0.0
    %v1099 = vrot.slane %v1098, 4
    %v1100 = vadd.f32 %v1098, %v1099
    %v1101 = vrot.slane %v1100, 2
    %v1102 = vadd.f32 %v1100, %v1101
    %v1103 = vrot.slane %v1102, 1
    %v1104 = vadd.f32 %v1102, %v1103
    %vm1105 = vcmp.eq.s32.totalorder %v951, 0
    %vm1106 = vcmp.gt.s32.totalorder %v31, 0
    %vm1107 = vmor %vm1105, %vm1106
    %v1108 = vsel %vm33, 1, 0
    %v1109 = vlaneseq
    %v1110 = vshrl.u32 %v1109, 7
    %v1111 = vsub.s32 0, %v1110
    %v1112 = vrot.slane %v1108, %v1111
    %vm1113 = vcmp.eq.s32.totalorder %v1112, 1
    %vm1114 = vmand %vm1107, %vm1113
    %vm1123 = vcmask 1041409
    %v1124 = vsel %vm1123, %v1062, %v1055
    %vm1125 = vcmask 1042434
    %v1126 = vsel %vm1125, %v1069, %v1124
    %vm1127 = vcmask 1043459
    %v1128 = vsel %vm1127, %v1076, %v1126
    %vm1129 = vcmask 1044484
    %v1130 = vsel %vm1129, %v1083, %v1128
    %vm1131 = vcmask 1045509
    %v1132 = vsel %vm1131, %v1090, %v1130
    %vm1133 = vcmask 1046534
    %v1134 = vsel %vm1133, %v1097, %v1132
    %vm1135 = vcmask 1047559
    %v1136 = vsel %vm1135, %v1104, %v1134
    %v1138 = vsel %vm1114, %v1136, 0.0
    %vm1139 = vcmask 15360
    %v1140 = vsel %vm1139, %v1138, 0.0
    %1141 = vadd.xlane.f32.xlu0 %v1140
    %v1142 = vpop.xlane.xlu0 %1141
    %v1143 = vrot.slane %v1142, 4
    %v1144 = vadd.f32 %v1142, %v1143
    %v1145 = vrot.slane %v1144, 2
    %v1146 = vadd.f32 %v1144, %v1145
    %v1147 = vrot.slane %v1146, 1
    %v1148 = vadd.f32 %v1146, %v1147
    %s1149 = vtos %v1148
    %v1150 = vlaneseq
    %v1151 = vshrl.u32 %v1150, 7
    %v1152 = vsub.s32 0, %v1151
    %v1153 = vrot.slane %v30, %v1152
    %vm1154 = vcmp.eq.s32.totalorder %v951, %v1153
    %v1155 = vsel %vm1154, %v61, 0.0
    %v1156 = vsel %vm153, %v1155, 0.0
    %v1157 = vrot.slane %v1156, 4
    %v1158 = vadd.f32 %v1156, %v1157
    %v1159 = vrot.slane %v1158, 2
    %v1160 = vadd.f32 %v1158, %v1159
    %v1161 = vrot.slane %v1160, 1
    %v1162 = vadd.f32 %v1160, %v1161
    %v1163 = vsub.s32 %v32, 1
    %v1164 = vlaneseq
    %v1165 = vshrl.u32 %v1164, 7
    %v1166 = vsub.s32 0, %v1165
    %v1167 = vrot.slane %v1163, %v1166
    %vm1168 = vcmp.eq.s32.totalorder %v951, %v1167
    %v1169 = vsel %vm1168, %v30, 0
    %v1170 = vsel %vm1139, %v1169, 0
    %v1171 = vrot.slane %v1170, 4
    %v1172 = vadd.s32 %v1170, %v1171
    %v1173 = vrot.slane %v1172, 2
    %v1174 = vadd.s32 %v1172, %v1173
    %v1175 = vrot.slane %v1174, 1
    %v1176 = vadd.s32 %v1174, %v1175
    %vm1177 = vcmp.eq.s32.totalorder %v951, %v1176
    %v1178 = vsel %vm1177, %v915, 0.0
    %v1179 = vsel %vm153, %v1178, 0.0
    %v1180 = vrot.slane %v1179, 4
    %v1181 = vadd.f32 %v1179, %v1180
    %v1182 = vrot.slane %v1181, 2
    %v1183 = vadd.f32 %v1181, %v1182
    %v1184 = vrot.slane %v1183, 1
    %v1185 = vadd.f32 %v1183, %v1184
    %vm1186 = vcmp.eq.s32.totalorder %v975, 0
    %vm1187 = vcmp.eq.s32.totalorder %v989, 0
    %vm1188 = vcmp.eq.s32.totalorder %v997, 0
    %vm1189 = vcmp.eq.s32.totalorder %v999, 0
    %vm1190 = vcmp.eq.s32.totalorder %v982, 0
    %vm1191 = vcmp.eq.s32.totalorder %v996, 0
    %vm1192 = vcmp.eq.s32.totalorder %v998, 0
    %v1193 = vsel %vm1186, 1, 0
    %v1194 = vsel %vm1187, 1, 0
    %v1195 = vsel %vm1188, 1, 0
    %v1196 = vsel %vm1189, 1, 0
    %v1197 = vsel %vm1190, 1, 0
    %v1198 = vsel %vm1191, 1, 0
    %v1199 = vsel %vm1192, 1, 0
    %v1200 = vlaneseq
    %v1201 = vshrl.u32 %v1200, 7
    %v1202 = vsub.s32 0, %v1201
    %v1203 = vrot.slane %v1193, %v1202
    %v1204 = vlaneseq
    %v1205 = vshrl.u32 %v1204, 7
    %v1206 = vsub.s32 0, %v1205
    %v1207 = vrot.slane %v1194, %v1206
    %v1208 = vlaneseq
    %v1209 = vshrl.u32 %v1208, 7
    %v1210 = vsub.s32 0, %v1209
    %v1211 = vrot.slane %v1195, %v1210
    %v1212 = vlaneseq
    %v1213 = vshrl.u32 %v1212, 7
    %v1214 = vsub.s32 0, %v1213
    %v1215 = vrot.slane %v1196, %v1214
    %v1216 = vlaneseq
    %v1217 = vshrl.u32 %v1216, 7
    %v1218 = vsub.s32 0, %v1217
    %v1219 = vrot.slane %v1197, %v1218
    %v1220 = vlaneseq
    %v1221 = vshrl.u32 %v1220, 7
    %v1222 = vsub.s32 0, %v1221
    %v1223 = vrot.slane %v1198, %v1222
    %v1224 = vlaneseq
    %v1225 = vshrl.u32 %v1224, 7
    %v1226 = vsub.s32 0, %v1225
    %v1227 = vrot.slane %v1199, %v1226
    %vm1228 = vcmp.eq.s32.totalorder %v1203, 1
    %vm1229 = vcmp.eq.s32.totalorder %v1207, 1
    %vm1230 = vcmp.eq.s32.totalorder %v1211, 1
    %vm1231 = vcmp.eq.s32.totalorder %v1215, 1
    %vm1232 = vcmp.eq.s32.totalorder %v1219, 1
    %vm1233 = vcmp.eq.s32.totalorder %v1223, 1
    %vm1234 = vcmp.eq.s32.totalorder %v1227, 1
    %v1235 = vsel %vm1228, %v40, 0.0
    %v1236 = vsel %vm1229, %v40, 0.0
    %v1237 = vsel %vm1230, %v40, 0.0
    %v1238 = vsel %vm1231, %v40, 0.0
    %v1239 = vsel %vm1232, %v40, 0.0
    %v1240 = vsel %vm1233, %v40, 0.0
    %v1241 = vsel %vm1234, %v40, 0.0
    %v1242 = vadd.f32 %v1235, 0.0
    %v1243 = vadd.f32 %v1236, 0.0
    %v1244 = vadd.f32 %v1237, 0.0
    %v1245 = vadd.f32 %v1238, 0.0
    %v1246 = vadd.f32 %v1239, 0.0
    %v1247 = vadd.f32 %v1240, 0.0
    %v1248 = vadd.f32 %v1241, 0.0
    %vm1249 = vcmp.eq.s32.totalorder %v975, 1
    %vm1250 = vcmp.eq.s32.totalorder %v989, 1
    %vm1251 = vcmp.eq.s32.totalorder %v997, 1
    %vm1252 = vcmp.eq.s32.totalorder %v999, 1
    %vm1253 = vcmp.eq.s32.totalorder %v982, 1
    %vm1254 = vcmp.eq.s32.totalorder %v996, 1
    %vm1255 = vcmp.eq.s32.totalorder %v998, 1
    %v1256 = vsel %vm1249, 1, 0
    %v1257 = vsel %vm1250, 1, 0
    %v1258 = vsel %vm1251, 1, 0
    %v1259 = vsel %vm1252, 1, 0
    %v1260 = vsel %vm1253, 1, 0
    %v1261 = vsel %vm1254, 1, 0
    %v1262 = vsel %vm1255, 1, 0
    %v1263 = vlaneseq
    %v1264 = vshrl.u32 %v1263, 7
    %v1265 = vsub.s32 0, %v1264
    %v1266 = vrot.slane %v1256, %v1265
    %v1267 = vlaneseq
    %v1268 = vshrl.u32 %v1267, 7
    %v1269 = vsub.s32 0, %v1268
    %v1270 = vrot.slane %v1257, %v1269
    %v1271 = vlaneseq
    %v1272 = vshrl.u32 %v1271, 7
    %v1273 = vsub.s32 0, %v1272
    %v1274 = vrot.slane %v1258, %v1273
    %v1275 = vlaneseq
    %v1276 = vshrl.u32 %v1275, 7
    %v1277 = vsub.s32 0, %v1276
    %v1278 = vrot.slane %v1259, %v1277
    %v1279 = vlaneseq
    %v1280 = vshrl.u32 %v1279, 7
    %v1281 = vsub.s32 0, %v1280
    %v1282 = vrot.slane %v1260, %v1281
    %v1283 = vlaneseq
    %v1284 = vshrl.u32 %v1283, 7
    %v1285 = vsub.s32 0, %v1284
    %v1286 = vrot.slane %v1261, %v1285
    %v1287 = vlaneseq
    %v1288 = vshrl.u32 %v1287, 7
    %v1289 = vsub.s32 0, %v1288
    %v1290 = vrot.slane %v1262, %v1289
    %vm1291 = vcmp.eq.s32.totalorder %v1266, 1
    %vm1292 = vcmp.eq.s32.totalorder %v1270, 1
    %vm1293 = vcmp.eq.s32.totalorder %v1274, 1
    %vm1294 = vcmp.eq.s32.totalorder %v1278, 1
    %vm1295 = vcmp.eq.s32.totalorder %v1282, 1
    %vm1296 = vcmp.eq.s32.totalorder %v1286, 1
    %vm1297 = vcmp.eq.s32.totalorder %v1290, 1
    %v1298 = vsel %vm1291, %v47, 0.0
    %v1299 = vsel %vm1292, %v47, 0.0
    %v1300 = vsel %vm1293, %v47, 0.0
    %v1301 = vsel %vm1294, %v47, 0.0
    %v1302 = vsel %vm1295, %v47, 0.0
    %v1303 = vsel %vm1296, %v47, 0.0
    %v1304 = vsel %vm1297, %v47, 0.0
    %v1305 = vadd.f32 %v1242, %v1298
    %v1306 = vadd.f32 %v1243, %v1299
    %v1307 = vadd.f32 %v1244, %v1300
    %v1308 = vadd.f32 %v1245, %v1301
    %v1309 = vadd.f32 %v1246, %v1302
    %v1310 = vadd.f32 %v1247, %v1303
    %v1311 = vadd.f32 %v1248, %v1304
    %vm1312 = vcmp.eq.s32.totalorder %v975, 2
    %vm1313 = vcmp.eq.s32.totalorder %v989, 2
    %vm1314 = vcmp.eq.s32.totalorder %v997, 2
    %vm1315 = vcmp.eq.s32.totalorder %v999, 2
    %vm1316 = vcmp.eq.s32.totalorder %v982, 2
    %vm1317 = vcmp.eq.s32.totalorder %v996, 2
    %vm1318 = vcmp.eq.s32.totalorder %v998, 2
    %v1319 = vsel %vm1312, 1, 0
    %v1320 = vsel %vm1313, 1, 0
    %v1321 = vsel %vm1314, 1, 0
    %v1322 = vsel %vm1315, 1, 0
    %v1323 = vsel %vm1316, 1, 0
    %v1324 = vsel %vm1317, 1, 0
    %v1325 = vsel %vm1318, 1, 0
    %v1326 = vlaneseq
    %v1327 = vshrl.u32 %v1326, 7
    %v1328 = vsub.s32 0, %v1327
    %v1329 = vrot.slane %v1319, %v1328
    %v1330 = vlaneseq
    %v1331 = vshrl.u32 %v1330, 7
    %v1332 = vsub.s32 0, %v1331
    %v1333 = vrot.slane %v1320, %v1332
    %v1334 = vlaneseq
    %v1335 = vshrl.u32 %v1334, 7
    %v1336 = vsub.s32 0, %v1335
    %v1337 = vrot.slane %v1321, %v1336
    %v1338 = vlaneseq
    %v1339 = vshrl.u32 %v1338, 7
    %v1340 = vsub.s32 0, %v1339
    %v1341 = vrot.slane %v1322, %v1340
    %v1342 = vlaneseq
    %v1343 = vshrl.u32 %v1342, 7
    %v1344 = vsub.s32 0, %v1343
    %v1345 = vrot.slane %v1323, %v1344
    %v1346 = vlaneseq
    %v1347 = vshrl.u32 %v1346, 7
    %v1348 = vsub.s32 0, %v1347
    %v1349 = vrot.slane %v1324, %v1348
    %v1350 = vlaneseq
    %v1351 = vshrl.u32 %v1350, 7
    %v1352 = vsub.s32 0, %v1351
    %v1353 = vrot.slane %v1325, %v1352
    %vm1354 = vcmp.eq.s32.totalorder %v1329, 1
    %vm1355 = vcmp.eq.s32.totalorder %v1333, 1
    %vm1356 = vcmp.eq.s32.totalorder %v1337, 1
    %vm1357 = vcmp.eq.s32.totalorder %v1341, 1
    %vm1358 = vcmp.eq.s32.totalorder %v1345, 1
    %vm1359 = vcmp.eq.s32.totalorder %v1349, 1
    %vm1360 = vcmp.eq.s32.totalorder %v1353, 1
    %v1361 = vsel %vm1354, %v54, 0.0
    %v1362 = vsel %vm1355, %v54, 0.0
    %v1363 = vsel %vm1356, %v54, 0.0
    %v1364 = vsel %vm1357, %v54, 0.0
    %v1365 = vsel %vm1358, %v54, 0.0
    %v1366 = vsel %vm1359, %v54, 0.0
    %v1367 = vsel %vm1360, %v54, 0.0
    %v1368 = vadd.f32 %v1305, %v1361
    %v1369 = vadd.f32 %v1306, %v1362
    %v1370 = vadd.f32 %v1307, %v1363
    %v1371 = vadd.f32 %v1308, %v1364
    %v1372 = vadd.f32 %v1309, %v1365
    %v1373 = vadd.f32 %v1310, %v1366
    %v1374 = vadd.f32 %v1311, %v1367
    %vm1375 = vcmp.eq.s32.totalorder %v975, 3
    %vm1376 = vcmp.eq.s32.totalorder %v989, 3
    %vm1377 = vcmp.eq.s32.totalorder %v997, 3
    %vm1378 = vcmp.eq.s32.totalorder %v999, 3
    %vm1379 = vcmp.eq.s32.totalorder %v982, 3
    %vm1380 = vcmp.eq.s32.totalorder %v996, 3
    %vm1381 = vcmp.eq.s32.totalorder %v998, 3
    %v1382 = vsel %vm1375, 1, 0
    %v1383 = vsel %vm1376, 1, 0
    %v1384 = vsel %vm1377, 1, 0
    %v1385 = vsel %vm1378, 1, 0
    %v1386 = vsel %vm1379, 1, 0
    %v1387 = vsel %vm1380, 1, 0
    %v1388 = vsel %vm1381, 1, 0
    %v1389 = vlaneseq
    %v1390 = vshrl.u32 %v1389, 7
    %v1391 = vsub.s32 0, %v1390
    %v1392 = vrot.slane %v1382, %v1391
    %v1393 = vlaneseq
    %v1394 = vshrl.u32 %v1393, 7
    %v1395 = vsub.s32 0, %v1394
    %v1396 = vrot.slane %v1383, %v1395
    %v1397 = vlaneseq
    %v1398 = vshrl.u32 %v1397, 7
    %v1399 = vsub.s32 0, %v1398
    %v1400 = vrot.slane %v1384, %v1399
    %v1401 = vlaneseq
    %v1402 = vshrl.u32 %v1401, 7
    %v1403 = vsub.s32 0, %v1402
    %v1404 = vrot.slane %v1385, %v1403
    %v1405 = vlaneseq
    %v1406 = vshrl.u32 %v1405, 7
    %v1407 = vsub.s32 0, %v1406
    %v1408 = vrot.slane %v1386, %v1407
    %v1409 = vlaneseq
    %v1410 = vshrl.u32 %v1409, 7
    %v1411 = vsub.s32 0, %v1410
    %v1412 = vrot.slane %v1387, %v1411
    %v1413 = vlaneseq
    %v1414 = vshrl.u32 %v1413, 7
    %v1415 = vsub.s32 0, %v1414
    %v1416 = vrot.slane %v1388, %v1415
    %vm1417 = vcmp.eq.s32.totalorder %v1392, 1
    %vm1418 = vcmp.eq.s32.totalorder %v1396, 1
    %vm1419 = vcmp.eq.s32.totalorder %v1400, 1
    %vm1420 = vcmp.eq.s32.totalorder %v1404, 1
    %vm1421 = vcmp.eq.s32.totalorder %v1408, 1
    %vm1422 = vcmp.eq.s32.totalorder %v1412, 1
    %vm1423 = vcmp.eq.s32.totalorder %v1416, 1
    %v1424 = vsel %vm1417, %v61, 0.0
    %v1425 = vsel %vm1418, %v61, 0.0
    %v1426 = vsel %vm1419, %v61, 0.0
    %v1427 = vsel %vm1420, %v61, 0.0
    %v1428 = vsel %vm1421, %v61, 0.0
    %v1429 = vsel %vm1422, %v61, 0.0
    %v1430 = vsel %vm1423, %v61, 0.0
    %v1431 = vadd.f32 %v1368, %v1424
    %v1432 = vadd.f32 %v1369, %v1425
    %v1433 = vadd.f32 %v1370, %v1426
    %v1434 = vadd.f32 %v1371, %v1427
    %v1435 = vadd.f32 %v1372, %v1428
    %v1436 = vadd.f32 %v1373, %v1429
    %v1437 = vadd.f32 %v1374, %v1430
    %vm1438 = vcmp.eq.s32.totalorder %v975, 4
    %vm1439 = vcmp.eq.s32.totalorder %v989, 4
    %vm1440 = vcmp.eq.s32.totalorder %v997, 4
    %vm1441 = vcmp.eq.s32.totalorder %v999, 4
    %vm1442 = vcmp.eq.s32.totalorder %v982, 4
    %vm1443 = vcmp.eq.s32.totalorder %v996, 4
    %vm1444 = vcmp.eq.s32.totalorder %v998, 4
    %v1445 = vsel %vm1438, 1, 0
    %v1446 = vsel %vm1439, 1, 0
    %v1447 = vsel %vm1440, 1, 0
    %v1448 = vsel %vm1441, 1, 0
    %v1449 = vsel %vm1442, 1, 0
    %v1450 = vsel %vm1443, 1, 0
    %v1451 = vsel %vm1444, 1, 0
    %v1452 = vlaneseq
    %v1453 = vshrl.u32 %v1452, 7
    %v1454 = vsub.s32 0, %v1453
    %v1455 = vrot.slane %v1445, %v1454
    %v1456 = vlaneseq
    %v1457 = vshrl.u32 %v1456, 7
    %v1458 = vsub.s32 0, %v1457
    %v1459 = vrot.slane %v1446, %v1458
    %v1460 = vlaneseq
    %v1461 = vshrl.u32 %v1460, 7
    %v1462 = vsub.s32 0, %v1461
    %v1463 = vrot.slane %v1447, %v1462
    %v1464 = vlaneseq
    %v1465 = vshrl.u32 %v1464, 7
    %v1466 = vsub.s32 0, %v1465
    %v1467 = vrot.slane %v1448, %v1466
    %v1468 = vlaneseq
    %v1469 = vshrl.u32 %v1468, 7
    %v1470 = vsub.s32 0, %v1469
    %v1471 = vrot.slane %v1449, %v1470
    %v1472 = vlaneseq
    %v1473 = vshrl.u32 %v1472, 7
    %v1474 = vsub.s32 0, %v1473
    %v1475 = vrot.slane %v1450, %v1474
    %v1476 = vlaneseq
    %v1477 = vshrl.u32 %v1476, 7
    %v1478 = vsub.s32 0, %v1477
    %v1479 = vrot.slane %v1451, %v1478
    %vm1480 = vcmp.eq.s32.totalorder %v1455, 1
    %vm1481 = vcmp.eq.s32.totalorder %v1459, 1
    %vm1482 = vcmp.eq.s32.totalorder %v1463, 1
    %vm1483 = vcmp.eq.s32.totalorder %v1467, 1
    %vm1484 = vcmp.eq.s32.totalorder %v1471, 1
    %vm1485 = vcmp.eq.s32.totalorder %v1475, 1
    %vm1486 = vcmp.eq.s32.totalorder %v1479, 1
    %v1487 = vsel %vm1480, %v68, 0.0
    %v1488 = vsel %vm1481, %v68, 0.0
    %v1489 = vsel %vm1482, %v68, 0.0
    %v1490 = vsel %vm1483, %v68, 0.0
    %v1491 = vsel %vm1484, %v68, 0.0
    %v1492 = vsel %vm1485, %v68, 0.0
    %v1493 = vsel %vm1486, %v68, 0.0
    %v1494 = vadd.f32 %v1431, %v1487
    %v1495 = vadd.f32 %v1432, %v1488
    %v1496 = vadd.f32 %v1433, %v1489
    %v1497 = vadd.f32 %v1434, %v1490
    %v1498 = vadd.f32 %v1435, %v1491
    %v1499 = vadd.f32 %v1436, %v1492
    %v1500 = vadd.f32 %v1437, %v1493
    %v1501 = vsel %vm1034, %v1494, 0.0
    %v1502 = vsel %vm1035, %v1495, 0.0
    %v1503 = vsel %vm1036, %v1496, 0.0
    %v1504 = vsel %vm1037, %v1497, 0.0
    %v1505 = vsel %vm1038, %v1498, 0.0
    %v1506 = vsel %vm1039, %v1499, 0.0
    %v1507 = vsel %vm1040, %v1500, 0.0
    %v1508 = vsel %vm153, %v1501, 0.0
    %v1509 = vrot.slane %v1508, 4
    %v1510 = vadd.f32 %v1508, %v1509
    %v1511 = vrot.slane %v1510, 2
    %v1512 = vadd.f32 %v1510, %v1511
    %v1513 = vrot.slane %v1512, 1
    %v1514 = vadd.f32 %v1512, %v1513
    %v1515 = vsel %vm153, %v1502, 0.0
    %v1516 = vrot.slane %v1515, 4
    %v1517 = vadd.f32 %v1515, %v1516
    %v1518 = vrot.slane %v1517, 2
    %v1519 = vadd.f32 %v1517, %v1518
    %v1520 = vrot.slane %v1519, 1
    %v1521 = vadd.f32 %v1519, %v1520
    %v1522 = vsel %vm153, %v1503, 0.0
    %v1523 = vrot.slane %v1522, 4
    %v1524 = vadd.f32 %v1522, %v1523
    %v1525 = vrot.slane %v1524, 2
    %v1526 = vadd.f32 %v1524, %v1525
    %v1527 = vrot.slane %v1526, 1
    %v1528 = vadd.f32 %v1526, %v1527
    %v1529 = vsel %vm153, %v1504, 0.0
    %v1530 = vrot.slane %v1529, 4
    %v1531 = vadd.f32 %v1529, %v1530
    %v1532 = vrot.slane %v1531, 2
    %v1533 = vadd.f32 %v1531, %v1532
    %v1534 = vrot.slane %v1533, 1
    %v1535 = vadd.f32 %v1533, %v1534
    %v1536 = vsel %vm153, %v1505, 0.0
    %v1537 = vrot.slane %v1536, 4
    %v1538 = vadd.f32 %v1536, %v1537
    %v1539 = vrot.slane %v1538, 2
    %v1540 = vadd.f32 %v1538, %v1539
    %v1541 = vrot.slane %v1540, 1
    %v1542 = vadd.f32 %v1540, %v1541
    %v1543 = vsel %vm153, %v1506, 0.0
    %v1544 = vrot.slane %v1543, 4
    %v1545 = vadd.f32 %v1543, %v1544
    %v1546 = vrot.slane %v1545, 2
    %v1547 = vadd.f32 %v1545, %v1546
    %v1548 = vrot.slane %v1547, 1
    %v1549 = vadd.f32 %v1547, %v1548
    %v1550 = vsel %vm153, %v1507, 0.0
    %v1551 = vrot.slane %v1550, 4
    %v1552 = vadd.f32 %v1550, %v1551
    %v1553 = vrot.slane %v1552, 2
    %v1554 = vadd.f32 %v1552, %v1553
    %v1555 = vrot.slane %v1554, 1
    %v1556 = vadd.f32 %v1554, %v1555
    %v1564 = vsel %vm1125, %v1521, %v1514
    %v1565 = vsel %vm1127, %v1528, %v1564
    %v1566 = vsel %vm1129, %v1535, %v1565
    %v1567 = vsel %vm1131, %v1542, %v1566
    %v1568 = vsel %vm1133, %v1549, %v1567
    %v1569 = vsel %vm1135, %v1556, %v1568
    %v1571 = vsel %vm1106, %v1569, 0.0
    %v1573 = vrot.slane %v1571, 1
    %vm1575 = vcmask 14336
    %v1576 = vsel %vm1575, %v1573, 0.0
    %1577 = vadd.xlane.f32.xlu0 %v1576
    %v1578 = vpop.xlane.xlu0 %1577
    %v1579 = vrot.slane %v1578, 4
    %v1580 = vadd.f32 %v1578, %v1579
    %v1581 = vrot.slane %v1580, 2
    %v1582 = vadd.f32 %v1580, %v1581
    %v1583 = vrot.slane %v1582, 1
    %v1584 = vadd.f32 %v1582, %v1583
    %s1585 = vtos %v1584
    %v1586 = vadd.f32 %v1162, %v1185
    %v1587 = vsel %vm33, %v1586, 0.0
    %v1588 = vsel %vm939, %v1587, 0.0
    %1589 = vadd.xlane.f32.xlu0 %v1588
    %v1590 = vpop.xlane.xlu0 %1589
    %v1591 = vrot.slane %v1590, 4
    %v1592 = vadd.f32 %v1590, %v1591
    %v1593 = vrot.slane %v1592, 2
    %v1594 = vadd.f32 %v1592, %v1593
    %v1595 = vrot.slane %v1594, 1
    %v1596 = vadd.f32 %v1594, %v1595
    %s1597 = vtos %v1596
    %s1598 = sadd.f32 %s1597, %s1585
    %s1599 = sadd.f32 %s1598, %s1149
    %v1600 = vlaneseq
    %v1601 = vand.u32 %v1600, 127
    %vm1602 = vcmp.eq.s32.totalorder %v1601, 0
    %vm1603 = vmand %vm1105, %vm1602
    %v1604 = vstv %s949
    %v1605 = vsel %vm1603, %v1604, 0.0
    %vm1606 = vcmp.eq.s32.totalorder %v1601, 1
    %vm1607 = vmand %vm1105, %vm1606
    %v1608 = vstv %s1599
    %v1609 = vsel %vm1607, %v1608, %v1605
    %1610 = vst [vmem:[#allocation2] sm:$0xff] %v1609
    // Predicated region
    $region22: #{tpu_custom_call.1} parent=1 // pred_check
      _
    $region23: #{tpu_custom_call.1} parent=1 // pred_check_branch
      %1612 = sbr.rel (0) target = $region25
    $region24: #{tpu_custom_call.1} parent=1 // pred_region
      %s1614 = ssub.s32 128, 128
      %1615 = vsyncadd [#allocation3], %s1614
      %s1617 = sshll.u32 [#allocation2], 4
      %s1618 = int_to_ptr.vmem [resolvable:$true] %s1617
      %1620 = dma.vmem_to_hbm [thread:$0]  %s1618, 128, %s5, [#allocation3]
    $region25: #{tpu_custom_call.1} parent=1 // pred_fallthru
      _
    // Predicated region
    $region26: #{tpu_custom_call.1} parent=1 // pred_check
      _
    $region27: #{tpu_custom_call.1} parent=1 // pred_check_branch
      %1622 = sbr.rel (0) target = $region29
    $region28: #{tpu_custom_call.1} parent=1 // pred_region
      %1623 = dma.done [#allocation3], 128
    $region29: #{tpu_custom_call.1} parent=1 // pred_fallthru
      _
    %1624 = vsyncpa [#allocation3], 1

</llo_original>
